<compile_context>
chip_gen: v7x
topology: tpu7x:2x2x1
jax: 0.10.0
libtpu: 0.0.40
codegen_flags: <defaults>
</compile_context>

<pallas_src>
import math
import functools

import jax
import jax.numpy as jnp
from jax.experimental import pallas as pl
from jax.experimental.pallas import tpu as pltpu


# Row layout of the packed per-layer small-parameter array (f32, lane-padded to Dmax).
_ROW_BQ, _ROW_BK, _ROW_BV, _ROW_BO = 0, 1, 2, 3
_ROW_B1, _ROW_B2 = 4, 5
_ROW_LN1W, _ROW_LN1B, _ROW_LN2W, _ROW_LN2B = 6, 7, 8, 9
_N_PARAM_ROWS = 16  # padded to a sublane-friendly count


def _layer_norm(v, w, b, eps=1e-5):
    mu = jnp.mean(v, axis=-1, keepdims=True)
    var = jnp.mean((v - mu) ** 2, axis=-1, keepdims=True)
    return (v - mu) * jax.lax.rsqrt(var + eps) * w + b


def _fused_encoder_kernel(x_ref, wq_ref, wk_ref, wv_ref, wo_ref,
                          w1_ref, w2_ref, pvec_ref,
                          o_ref, act_ref, *, num_heads):
    """One encoder layer for one batch block.

    grid = (batch_blocks, num_layers).
    x_ref:    (B, S, E) input block (consumed only at layer 0).
    act_ref:  (B, S, E) f32 VMEM scratch carrying the activation across layers.
    pvec_ref: (16, Dmax) packed biases / LayerNorm params for the current layer.
    Weight refs are the current layer's pre-transposed bf16 slices.
    """
    layer = pl.program_id(1)
    last = pl.num_programs(1) - 1

    @pl.when(layer == 0)
    def _():
        act_ref[...] = x_ref[...].astype(jnp.float32)

    x = act_ref[...]                                  # (B, S, E) f32
    B, S, E = x.shape
    Hp = w1_ref.shape[-1]
    dh = E // num_heads
    scale = 1.0 / math.sqrt(dh)

    pv = pvec_ref[...]                                # (16, Dmax) f32
    bq = pv[_ROW_BQ:_ROW_BQ + 1, :E]
    bk = pv[_ROW_BK:_ROW_BK + 1, :E]
    bvb = pv[_ROW_BV:_ROW_BV + 1, :E]
    bo = pv[_ROW_BO:_ROW_BO + 1, :E]
    b1 = pv[_ROW_B1:_ROW_B1 + 1, :Hp]
    b2 = pv[_ROW_B2:_ROW_B2 + 1, :E]
    ln1w = pv[_ROW_LN1W:_ROW_LN1W + 1, :E]
    ln1b = pv[_ROW_LN1B:_ROW_LN1B + 1, :E]
    ln2w = pv[_ROW_LN2W:_ROW_LN2W + 1, :E]
    ln2b = pv[_ROW_LN2B:_ROW_LN2B + 1, :E]

    x2 = x.reshape(B * S, E)                          # rows for dense matmuls
    xb = x2.astype(jnp.bfloat16)

    # ---- multi-head self-attention (pre-transposed bf16 weights, f32 accum) -------
    q = jnp.dot(xb, wq_ref[...], preferred_element_type=jnp.float32) + bq
    k = jnp.dot(xb, wk_ref[...], preferred_element_type=jnp.float32) + bk
    v = jnp.dot(xb, wv_ref[...], preferred_element_type=jnp.float32) + bvb

    q3 = (q * scale).reshape(B, S, E).astype(jnp.bfloat16)   # scale folded before cast
    k3 = k.reshape(B, S, E).astype(jnp.bfloat16)
    v3 = v.reshape(B, S, E).astype(jnp.bfloat16)

    # Per-head attention, accumulated directly into the out-projection result
    # (removes the lane-axis concat and the ctx materialization of the old version).
    attn = jnp.zeros((B * S, E), jnp.float32)
    for h in range(num_heads):                        # static unroll over heads
        sl = slice(h * dh, (h + 1) * dh)
        s = jnp.einsum('bqd,bkd->bqk', q3[:, :, sl], k3[:, :, sl],
                       preferred_element_type=jnp.float32)         # (B, S, S) f32
        s = s - jnp.max(s, axis=-1, keepdims=True)
        p = jnp.exp(s)
        p = p * pl.reciprocal(jnp.sum(p, axis=-1, keepdims=True), approx=True)
        head = jnp.einsum('bqk,bkd->bqd', p.astype(jnp.bfloat16), v3[:, :, sl],
                          preferred_element_type=jnp.float32)       # (B, S, dh) f32
        attn = attn + jnp.dot(head.reshape(B * S, dh).astype(jnp.bfloat16),
                              wo_ref[sl, :], preferred_element_type=jnp.float32)
    attn = attn + bo

    # dropout layers are identity in eval mode.
    y = _layer_norm(x2 + attn, ln1w, ln1b)            # (B*S, E) f32

    # ---- feed-forward (hidden dim lane-padded; padded units are exactly zero) -----
    h1 = jnp.dot(y.astype(jnp.bfloat16), w1_ref[...],
                 preferred_element_type=jnp.float32) + b1
    h1 = jnp.maximum(h1, 0.0)                         # relu
    ff = jnp.dot(h1.astype(jnp.bfloat16), w2_ref[...],
                 preferred_element_type=jnp.float32) + b2

    z = _layer_norm(y + ff, ln2w, ln2b).reshape(B, S, E)

    @pl.when(layer < last)
    def _():
        act_ref[...] = z                              # carry to the next layer (VMEM)

    @pl.when(layer == last)
    def _():
        o_ref[...] = z.astype(o_ref.dtype)            # single output store per block


def _tpu_generation():
    """(num_tensorcores_per_chip, physical VMEM bytes per core), best effort."""
    try:
        kind = jax.devices()[0].device_kind.lower()
    except Exception:
        kind = ""
    if "v7" in kind:
        return 2, 64 * 1024 * 1024
    if "v5" in kind or "v6" in kind:
        return 1, 128 * 1024 * 1024
    return 1, 64 * 1024 * 1024  # conservative default for unknown generations


def _estimate_vmem(bt, S, E, Hp):
    rows = bt * S
    weights = 2 * 2 * (4 * E * E + 2 * E * Hp)               # bf16, double-buffered
    small = 2 * 4 * _N_PARAM_ROWS * max(E, Hp)               # packed f32 params, dbl-buf
    act = 4 * rows * E                                        # f32 activation scratch
    io = 2 * 2 * 4 * rows * E                                 # x-in + out blocks, dbl-buf
    interm = 2 * 4 * (bt * S * S + rows * Hp + 3 * rows * E)  # scores/q/k/v/h1 (x2 margin)
    return weights + small + act + io + interm


def _pick_batch_tile(N, S, E, Hp, num_cores, vmem_phys):
    """Generation-aware batch tile + VMEM limit."""
    budget = min(int(0.72 * vmem_phys), 100 * 1024 * 1024)
    row_cap = 2048 if num_cores == 1 else 1024                # single-TC: fatten M freely
    bt = 1
    for cand in range(1, N + 1):
        if cand * S <= row_cap and _estimate_vmem(cand, S, E, Hp) <= budget:
            bt = cand
    if num_cores >= 2:
        # Prefer >=2 batch blocks so both TensorCores get work.
        if -(-N // bt) < 2 and N >= 2:
            bt = -(-N // 2)
    else:
        # Avoid padding waste when a nearby divisor of N exists.
        divs = [d for d in range(1, bt + 1) if N % d == 0]
        if divs and divs[-1] * 2 >= bt:
            bt = divs[-1]
    vmem_limit = max(budget, 32 * 1024 * 1024)
    return bt, int(vmem_limit)


def _run_encoder(x_nse, params, num_heads, num_layers):
    """x_nse: (N, S, E). Runs all layers in one fused pallas_call. Returns (N, S, E)."""
    N, S, E = x_nse.shape
    Hp = params["w1_t"].shape[-1]
    Dmax = params["pvec"].shape[-1]
    num_cores, vmem_phys = _tpu_generation()
    B_tile, vmem_limit = _pick_batch_tile(N, S, E, Hp, num_cores, vmem_phys)

    n_blocks = -(-N // B_tile)
    N_pad = n_blocks * B_tile
    if N_pad != N:
        x_nse = jnp.pad(x_nse, ((0, N_pad - N), (0, 0), (0, 0)))

    def wspec(d1, d2):
        # Leading (squeezed) layer dim indexed by the layer grid axis.
        return pl.BlockSpec((None, d1, d2), lambda b, l: (l, 0, 0))

    in_specs = [
        pl.BlockSpec((B_tile, S, E), lambda b, l: (b, 0, 0)),   # x (resident across l)
        wspec(E, E), wspec(E, E), wspec(E, E),                  # Wq^T, Wk^T, Wv^T
        wspec(E, E),                                            # Wout^T
        wspec(E, Hp), wspec(Hp, E),                             # W1^T, W2^T
        wspec(_N_PARAM_ROWS, Dmax),                             # packed biases / LN params
    ]

    kernel = functools.partial(_fused_encoder_kernel, num_heads=num_heads)

    out = pl.pallas_call(
        kernel,
        out_shape=jax.ShapeDtypeStruct((N_pad, S, E), x_nse.dtype),
        grid_spec=pltpu.PrefetchScalarGridSpec(
            num_scalar_prefetch=0,
            grid=(n_blocks, num_layers),
            in_specs=in_specs,
            out_specs=pl.BlockSpec((B_tile, S, E), lambda b, l: (b, 0, 0)),
            scratch_shapes=[pltpu.VMEM((B_tile, S, E), jnp.float32)],
        ),
        compiler_params=pltpu.CompilerParams(
            dimension_semantics=("parallel", "arbitrary"),
            vmem_limit_bytes=vmem_limit,
        ),
    )(x_nse, params["wq_t"], params["wk_t"], params["wv_t"], params["wo_t"],
      params["w1_t"], params["w2_t"], params["pvec"])

    return out[:N] if N_pad != N else out


class PallasEncoder:
    """JAX/Pallas equivalent of the PyTorch `Encoder` module (eval mode)."""

    def __init__(self, input_dim, hidden_dim, num_layers, num_heads, dropout, key):
        assert input_dim % num_heads == 0
        self.num_heads = num_heads
        self.num_layers = num_layers
        E, H, L = input_dim, hidden_dim, num_layers
        Hp = -(-H // 128) * 128            # lane-pad FFN hidden (padded units are exact 0)
        Dmax = max(E, Hp)
        scale = 0.05

        def rand(k, shape):
            return scale * jax.random.normal(k, shape, jnp.float32)

        wq, wk, wv, wo, w1, w2, pvec = [], [], [], [], [], [], []
        layer_keys = jax.random.split(key, L)
        for i in range(L):
            ks = jax.random.split(layer_keys[i], 8)
            wqkv = rand(ks[0], (3 * E, E))             # PyTorch in_proj_weight layout
            bqkv = rand(ks[1], (3 * E,))
            wq.append(wqkv[0 * E:1 * E].T)             # pre-transposed -> (E, E)
            wk.append(wqkv[1 * E:2 * E].T)
            wv.append(wqkv[2 * E:3 * E].T)
            wo.append(rand(ks[2], (E, E)).T)           # out_proj.weight^T
            bo = rand(ks[3], (E,))                     # out_proj.bias (now honored)
            w1p = jnp.zeros((E, Hp), jnp.float32).at[:, :H].set(rand(ks[4], (H, E)).T)
            b1p = jnp.zeros((Hp,), jnp.float32).at[:H].set(rand(ks[5], (H,)))
            w2p = jnp.zeros((Hp, E), jnp.float32).at[:H, :].set(rand(ks[6], (E, H)).T)
            b2 = rand(ks[7], (E,))                     # linear2.bias (now honored)
            w1.append(w1p)
            w2.append(w2p)

            rows = jnp.zeros((_N_PARAM_ROWS, Dmax), jnp.float32)
            rows = rows.at[_ROW_BQ, :E].set(bqkv[0 * E:1 * E])
            rows = rows.at[_ROW_BK, :E].set(bqkv[1 * E:2 * E])
            rows = rows.at[_ROW_BV, :E].set(bqkv[2 * E:3 * E])
            rows = rows.at[_ROW_BO, :E].set(bo)
            rows = rows.at[_ROW_B1, :Hp].set(b1p)
            rows = rows.at[_ROW_B2, :E].set(b2)
            rows = rows.at[_ROW_LN1W, :E].set(jnp.ones((E,), jnp.float32))  # LN default
            rows = rows.at[_ROW_LN2W, :E].set(jnp.ones((E,), jnp.float32))  # weight=1,bias=0
            pvec.append(rows)

        self.params = {
            "wq_t": jnp.stack(wq).astype(jnp.bfloat16),
            "wk_t": jnp.stack(wk).astype(jnp.bfloat16),
            "wv_t": jnp.stack(wv).astype(jnp.bfloat16),
            "wo_t": jnp.stack(wo).astype(jnp.bfloat16),
            "w1_t": jnp.stack(w1).astype(jnp.bfloat16),
            "w2_t": jnp.stack(w2).astype(jnp.bfloat16),
            "pvec": jnp.stack(pvec),                   # (L, 16, Dmax) f32
        }

    def __call__(self, src):
        # src: (S, N, E) — PyTorch TransformerEncoder default layout (batch_first=False).
        x = jnp.transpose(src, (1, 0, 2))              # -> (N, S, E) for the kernel grid
        x = _run_encoder(x, self.params, self.num_heads, self.num_layers)
        return jnp.transpose(x, (1, 0, 2))             # back to (S, N, E)


if __name__ == "__main__":
    # Small, shape-consistent config: input_dim=32, hidden_dim=64, 2 layers, 4 heads.
    S, N, E, H = 8, 2, 32, 64
    key = jax.random.PRNGKey(0)
    k_src, k_params = jax.random.split(key)
    src = jax.random.normal(k_src, (S, N, E), jnp.float32)

    enc = PallasEncoder(input_dim=E, hidden_dim=H, num_layers=2,
                        num_heads=4, dropout=0.0, key=k_params)

    out = jax.block_until_ready(enc(src))
    assert out.shape == (S, N, E)
    assert bool(jnp.all(jnp.isfinite(out)))
    print("KERNEL_OK")
</pallas_src>

<mosaic_0001>
module attributes {stable_mosaic.version = 11 : i64} {
  func.func @_fused_encoder_kernel(%arg0: i32, %arg1: i32, %arg2: memref<2x8x32xf32, #tpu.memory_space<vmem>>, %arg3: memref<1x32x32xbf16, #tpu.memory_space<vmem>>, %arg4: memref<1x32x32xbf16, #tpu.memory_space<vmem>>, %arg5: memref<1x32x32xbf16, #tpu.memory_space<vmem>>, %arg6: memref<1x32x32xbf16, #tpu.memory_space<vmem>>, %arg7: memref<1x32x128xbf16, #tpu.memory_space<vmem>>, %arg8: memref<1x128x32xbf16, #tpu.memory_space<vmem>>, %arg9: memref<1x16x128xf32, #tpu.memory_space<vmem>>, %arg10: memref<2x8x32xf32, #tpu.memory_space<vmem>>, %arg11: memref<2x8x32xf32, #tpu.memory_space<vmem>>) attributes {dimension_semantics = [#tpu.dimension_semantics<parallel>, #tpu.dimension_semantics<arbitrary>], iteration_bounds = array<i64: 1, 2>, scalar_prefetch = 0 : i64, scratch_operands = 1 : i64, tpu.core_type = #tpu.core_type<tc>, window_params = [{transform_indices = @transform_0, window_bounds = array<i64: 2, 8, 32>}, {transform_indices = @transform_1, window_bounds = array<i64: 1, 32, 32>}, {transform_indices = @transform_2, window_bounds = array<i64: 1, 32, 32>}, {transform_indices = @transform_3, window_bounds = array<i64: 1, 32, 32>}, {transform_indices = @transform_4, window_bounds = array<i64: 1, 32, 32>}, {transform_indices = @transform_5, window_bounds = array<i64: 1, 32, 128>}, {transform_indices = @transform_6, window_bounds = array<i64: 1, 128, 32>}, {transform_indices = @transform_7, window_bounds = array<i64: 1, 16, 128>}, {transform_indices = @transform_8, window_bounds = array<i64: 2, 8, 32>}]} {
    %c0_i32 = arith.constant 0 : i32
    %0 = arith.cmpi eq, %arg1, %c0_i32 : i32
    %1 = arith.extui %0 : i1 to i32
    %c0_i32_0 = arith.constant 0 : i32
    %2 = arith.cmpi ne, %1, %c0_i32_0 : i32
    scf.if %2 {
      %c0_70 = arith.constant 0 : index
      %c0_71 = arith.constant 0 : index
      %c0_72 = arith.constant 0 : index
      %199 = vector.load %arg2[%c0_70, %c0_71, %c0_72] : memref<2x8x32xf32, #tpu.memory_space<vmem>>, vector<2x8x32xf32>
      %c0_73 = arith.constant 0 : index
      %c0_74 = arith.constant 0 : index
      %c0_75 = arith.constant 0 : index
      %200 = vector.load %arg11[%c0_73, %c0_74, %c0_75] : memref<2x8x32xf32, #tpu.memory_space<vmem>>, vector<2x8x32xf32>
      tpu.vector_store %arg11[%c0_73, %c0_74, %c0_75], %199 {strides = array<i32>} : memref<2x8x32xf32, #tpu.memory_space<vmem>>, vector<2x8x32xf32>,
    } else {
    }
    %c0 = arith.constant 0 : index
    %c0_1 = arith.constant 0 : index
    %c0_2 = arith.constant 0 : index
    %3 = vector.load %arg11[%c0, %c0_1, %c0_2] : memref<2x8x32xf32, #tpu.memory_space<vmem>>, vector<2x8x32xf32>
    %c0_3 = arith.constant 0 : index
    %c0_4 = arith.constant 0 : index
    %c0_5 = arith.constant 0 : index
    %4 = vector.load %arg9[%c0_3, %c0_4, %c0_5] : memref<1x16x128xf32, #tpu.memory_space<vmem>>, vector<1x16x128xf32>
    %5 = vector.shape_cast %4 : vector<1x16x128xf32> to vector<16x128xf32>
    %6 = vector.extract_strided_slice %5 {offsets = [0, 0], sizes = [1, 32], strides = [1, 1]} : vector<16x128xf32> to vector<1x32xf32>
    %7 = vector.extract_strided_slice %5 {offsets = [1, 0], sizes = [1, 32], strides = [1, 1]} : vector<16x128xf32> to vector<1x32xf32>
    %8 = vector.extract_strided_slice %5 {offsets = [2, 0], sizes = [1, 32], strides = [1, 1]} : vector<16x128xf32> to vector<1x32xf32>
    %9 = vector.extract_strided_slice %5 {offsets = [3, 0], sizes = [1, 32], strides = [1, 1]} : vector<16x128xf32> to vector<1x32xf32>
    %10 = vector.extract_strided_slice %5 {offsets = [4, 0], sizes = [1, 128], strides = [1, 1]} : vector<16x128xf32> to vector<1x128xf32>
    %11 = vector.extract_strided_slice %5 {offsets = [5, 0], sizes = [1, 32], strides = [1, 1]} : vector<16x128xf32> to vector<1x32xf32>
    %12 = vector.extract_strided_slice %5 {offsets = [6, 0], sizes = [1, 32], strides = [1, 1]} : vector<16x128xf32> to vector<1x32xf32>
    %13 = vector.extract_strided_slice %5 {offsets = [7, 0], sizes = [1, 32], strides = [1, 1]} : vector<16x128xf32> to vector<1x32xf32>
    %14 = vector.extract_strided_slice %5 {offsets = [8, 0], sizes = [1, 32], strides = [1, 1]} : vector<16x128xf32> to vector<1x32xf32>
    %15 = vector.extract_strided_slice %5 {offsets = [9, 0], sizes = [1, 32], strides = [1, 1]} : vector<16x128xf32> to vector<1x32xf32>
    %16 = vector.shape_cast %3 : vector<2x8x32xf32> to vector<16x32xf32>
    %17 = arith.truncf %16 : vector<16x32xf32> to vector<16x32xbf16>
    %c0_6 = arith.constant 0 : index
    %c0_7 = arith.constant 0 : index
    %c0_8 = arith.constant 0 : index
    %18 = vector.load %arg3[%c0_6, %c0_7, %c0_8] : memref<1x32x32xbf16, #tpu.memory_space<vmem>>, vector<1x32x32xbf16>
    %19 = vector.shape_cast %18 : vector<1x32x32xbf16> to vector<32x32xbf16>
    %cst = arith.constant dense<0.000000e+00> : vector<16x32xf32>
    %20 = tpu.matmul %17, %19, %cst {dimension_numbers = #tpu.dot_dimension_numbers<[1], [0], [0], [1], [0, 0, 1, 1], [], []>} : vector<16x32xbf16>, vector<32x32xbf16>, vector<16x32xf32> -> vector<16x32xf32>
    %21 = vector.broadcast %6 : vector<1x32xf32> to vector<16x32xf32>
    %22 = arith.addf %20, %21 : vector<16x32xf32>
    %c0_9 = arith.constant 0 : index
    %c0_10 = arith.constant 0 : index
    %c0_11 = arith.constant 0 : index
    %23 = vector.load %arg4[%c0_9, %c0_10, %c0_11] : memref<1x32x32xbf16, #tpu.memory_space<vmem>>, vector<1x32x32xbf16>
    %24 = vector.shape_cast %23 : vector<1x32x32xbf16> to vector<32x32xbf16>
    %cst_12 = arith.constant dense<0.000000e+00> : vector<16x32xf32>
    %25 = tpu.matmul %17, %24, %cst_12 {dimension_numbers = #tpu.dot_dimension_numbers<[1], [0], [0], [1], [0, 0, 1, 1], [], []>} : vector<16x32xbf16>, vector<32x32xbf16>, vector<16x32xf32> -> vector<16x32xf32>
    %26 = vector.broadcast %7 : vector<1x32xf32> to vector<16x32xf32>
    %27 = arith.addf %25, %26 : vector<16x32xf32>
    %c0_13 = arith.constant 0 : index
    %c0_14 = arith.constant 0 : index
    %c0_15 = arith.constant 0 : index
    %28 = vector.load %arg5[%c0_13, %c0_14, %c0_15] : memref<1x32x32xbf16, #tpu.memory_space<vmem>>, vector<1x32x32xbf16>
    %29 = vector.shape_cast %28 : vector<1x32x32xbf16> to vector<32x32xbf16>
    %cst_16 = arith.constant dense<0.000000e+00> : vector<16x32xf32>
    %30 = tpu.matmul %17, %29, %cst_16 {dimension_numbers = #tpu.dot_dimension_numbers<[1], [0], [0], [1], [0, 0, 1, 1], [], []>} : vector<16x32xbf16>, vector<32x32xbf16>, vector<16x32xf32> -> vector<16x32xf32>
    %31 = vector.broadcast %8 : vector<1x32xf32> to vector<16x32xf32>
    %32 = arith.addf %30, %31 : vector<16x32xf32>
    %cst_17 = arith.constant 0.353553385 : f32
    %33 = vector.broadcast %cst_17 : f32 to vector<16x32xf32>
    %34 = arith.mulf %22, %33 : vector<16x32xf32>
    %35 = vector.shape_cast %34 : vector<16x32xf32> to vector<2x8x32xf32>
    %36 = arith.truncf %35 : vector<2x8x32xf32> to vector<2x8x32xbf16>
    %37 = vector.shape_cast %27 : vector<16x32xf32> to vector<2x8x32xf32>
    %38 = arith.truncf %37 : vector<2x8x32xf32> to vector<2x8x32xbf16>
    %39 = vector.shape_cast %32 : vector<16x32xf32> to vector<2x8x32xf32>
    %40 = arith.truncf %39 : vector<2x8x32xf32> to vector<2x8x32xbf16>
    %cst_18 = arith.constant 0.000000e+00 : f32
    %41 = vector.broadcast %cst_18 : f32 to vector<16x32xf32>
    %42 = vector.extract_strided_slice %36 {offsets = [0, 0, 0], sizes = [2, 8, 8], strides = [1, 1, 1]} : vector<2x8x32xbf16> to vector<2x8x8xbf16>
    %43 = vector.extract_strided_slice %38 {offsets = [0, 0, 0], sizes = [2, 8, 8], strides = [1, 1, 1]} : vector<2x8x32xbf16> to vector<2x8x8xbf16>
    "tpu.trace_start"() <{level = 10 : i32, message = "bqd,bkd->bqk"}> : () -> ()
    %cst_19 = arith.constant dense<0.000000e+00> : vector<2x8x8xf32>
    %44 = tpu.matmul %42, %43, %cst_19 {dimension_numbers = #tpu.dot_dimension_numbers<[2], [2], [1], [1], [0, 0, 0, 1, 1, 1], [0], [0]>} : vector<2x8x8xbf16>, vector<2x8x8xbf16>, vector<2x8x8xf32> -> vector<2x8x8xf32>
    "tpu.trace_stop"() : () -> ()
    %cst_20 = arith.constant dense<0xFF800000> : vector<2x8xf32>
    %45 = vector.multi_reduction <maximumf>, %44, %cst_20 [2] : vector<2x8x8xf32> to vector<2x8xf32>
    %46 = vector.shape_cast %45 : vector<2x8xf32> to vector<2x8x1xf32>
    %47 = vector.broadcast %46 : vector<2x8x1xf32> to vector<2x8x8xf32>
    %48 = arith.subf %44, %47 : vector<2x8x8xf32>
    %49 = math.exp %48 : vector<2x8x8xf32>
    %cst_21 = arith.constant dense<0.000000e+00> : vector<2x8xf32>
    %50 = vector.multi_reduction <add>, %49, %cst_21 [2] : vector<2x8x8xf32> to vector<2x8xf32>
    %51 = vector.shape_cast %50 : vector<2x8xf32> to vector<2x8x1xf32>
    %52 = tpu.reciprocal %51 {approx = true} : vector<2x8x1xf32> -> vector<2x8x1xf32>
    %53 = vector.broadcast %52 : vector<2x8x1xf32> to vector<2x8x8xf32>
    %54 = arith.mulf %49, %53 : vector<2x8x8xf32>
    %55 = arith.truncf %54 : vector<2x8x8xf32> to vector<2x8x8xbf16>
    %56 = vector.extract_strided_slice %40 {offsets = [0, 0, 0], sizes = [2, 8, 8], strides = [1, 1, 1]} : vector<2x8x32xbf16> to vector<2x8x8xbf16>
    "tpu.trace_start"() <{level = 10 : i32, message = "bqk,bkd->bqd"}> : () -> ()
    %cst_22 = arith.constant dense<0.000000e+00> : vector<2x8x8xf32>
    %57 = tpu.matmul %55, %56, %cst_22 {dimension_numbers = #tpu.dot_dimension_numbers<[2], [1], [1], [2], [0, 0, 0, 1, 1, 2], [0], [0]>} : vector<2x8x8xbf16>, vector<2x8x8xbf16>, vector<2x8x8xf32> -> vector<2x8x8xf32>
    "tpu.trace_stop"() : () -> ()
    %58 = vector.shape_cast %57 : vector<2x8x8xf32> to vector<16x8xf32>
    %59 = arith.truncf %58 : vector<16x8xf32> to vector<16x8xbf16>
    %c0_23 = arith.constant 0 : index
    %c0_24 = arith.constant 0 : index
    %c0_25 = arith.constant 0 : index
    %60 = vector.load %arg6[%c0_23, %c0_24, %c0_25] : memref<1x32x32xbf16, #tpu.memory_space<vmem>>, vector<1x8x32xbf16>
    %61 = vector.shape_cast %60 : vector<1x8x32xbf16> to vector<8x32xbf16>
    %cst_26 = arith.constant dense<0.000000e+00> : vector<16x32xf32>
    %62 = tpu.matmul %59, %61, %cst_26 {dimension_numbers = #tpu.dot_dimension_numbers<[1], [0], [0], [1], [0, 0, 1, 1], [], []>} : vector<16x8xbf16>, vector<8x32xbf16>, vector<16x32xf32> -> vector<16x32xf32>
    %63 = arith.addf %41, %62 : vector<16x32xf32>
    %64 = vector.extract_strided_slice %36 {offsets = [0, 0, 8], sizes = [2, 8, 8], strides = [1, 1, 1]} : vector<2x8x32xbf16> to vector<2x8x8xbf16>
    %65 = vector.extract_strided_slice %38 {offsets = [0, 0, 8], sizes = [2, 8, 8], strides = [1, 1, 1]} : vector<2x8x32xbf16> to vector<2x8x8xbf16>
    "tpu.trace_start"() <{level = 10 : i32, message = "bqd,bkd->bqk"}> : () -> ()
    %cst_27 = arith.constant dense<0.000000e+00> : vector<2x8x8xf32>
    %66 = tpu.matmul %64, %65, %cst_27 {dimension_numbers = #tpu.dot_dimension_numbers<[2], [2], [1], [1], [0, 0, 0, 1, 1, 1], [0], [0]>} : vector<2x8x8xbf16>, vector<2x8x8xbf16>, vector<2x8x8xf32> -> vector<2x8x8xf32>
    "tpu.trace_stop"() : () -> ()
    %cst_28 = arith.constant dense<0xFF800000> : vector<2x8xf32>
    %67 = vector.multi_reduction <maximumf>, %66, %cst_28 [2] : vector<2x8x8xf32> to vector<2x8xf32>
    %68 = vector.shape_cast %67 : vector<2x8xf32> to vector<2x8x1xf32>
    %69 = vector.broadcast %68 : vector<2x8x1xf32> to vector<2x8x8xf32>
    %70 = arith.subf %66, %69 : vector<2x8x8xf32>
    %71 = math.exp %70 : vector<2x8x8xf32>
    %cst_29 = arith.constant dense<0.000000e+00> : vector<2x8xf32>
    %72 = vector.multi_reduction <add>, %71, %cst_29 [2] : vector<2x8x8xf32> to vector<2x8xf32>
    %73 = vector.shape_cast %72 : vector<2x8xf32> to vector<2x8x1xf32>
    %74 = tpu.reciprocal %73 {approx = true} : vector<2x8x1xf32> -> vector<2x8x1xf32>
    %75 = vector.broadcast %74 : vector<2x8x1xf32> to vector<2x8x8xf32>
    %76 = arith.mulf %71, %75 : vector<2x8x8xf32>
    %77 = arith.truncf %76 : vector<2x8x8xf32> to vector<2x8x8xbf16>
    %78 = vector.extract_strided_slice %40 {offsets = [0, 0, 8], sizes = [2, 8, 8], strides = [1, 1, 1]} : vector<2x8x32xbf16> to vector<2x8x8xbf16>
    "tpu.trace_start"() <{level = 10 : i32, message = "bqk,bkd->bqd"}> : () -> ()
    %cst_30 = arith.constant dense<0.000000e+00> : vector<2x8x8xf32>
    %79 = tpu.matmul %77, %78, %cst_30 {dimension_numbers = #tpu.dot_dimension_numbers<[2], [1], [1], [2], [0, 0, 0, 1, 1, 2], [0], [0]>} : vector<2x8x8xbf16>, vector<2x8x8xbf16>, vector<2x8x8xf32> -> vector<2x8x8xf32>
    "tpu.trace_stop"() : () -> ()
    %80 = vector.shape_cast %79 : vector<2x8x8xf32> to vector<16x8xf32>
    %81 = arith.truncf %80 : vector<16x8xf32> to vector<16x8xbf16>
    %c0_31 = arith.constant 0 : index
    %c8 = arith.constant 8 : index
    %c0_32 = arith.constant 0 : index
    %82 = vector.load %arg6[%c0_31, %c8, %c0_32] : memref<1x32x32xbf16, #tpu.memory_space<vmem>>, vector<1x8x32xbf16>
    %83 = vector.shape_cast %82 : vector<1x8x32xbf16> to vector<8x32xbf16>
    %cst_33 = arith.constant dense<0.000000e+00> : vector<16x32xf32>
    %84 = tpu.matmul %81, %83, %cst_33 {dimension_numbers = #tpu.dot_dimension_numbers<[1], [0], [0], [1], [0, 0, 1, 1], [], []>} : vector<16x8xbf16>, vector<8x32xbf16>, vector<16x32xf32> -> vector<16x32xf32>
    %85 = arith.addf %63, %84 : vector<16x32xf32>
    %86 = vector.extract_strided_slice %36 {offsets = [0, 0, 16], sizes = [2, 8, 8], strides = [1, 1, 1]} : vector<2x8x32xbf16> to vector<2x8x8xbf16>
    %87 = vector.extract_strided_slice %38 {offsets = [0, 0, 16], sizes = [2, 8, 8], strides = [1, 1, 1]} : vector<2x8x32xbf16> to vector<2x8x8xbf16>
    "tpu.trace_start"() <{level = 10 : i32, message = "bqd,bkd->bqk"}> : () -> ()
    %cst_34 = arith.constant dense<0.000000e+00> : vector<2x8x8xf32>
    %88 = tpu.matmul %86, %87, %cst_34 {dimension_numbers = #tpu.dot_dimension_numbers<[2], [2], [1], [1], [0, 0, 0, 1, 1, 1], [0], [0]>} : vector<2x8x8xbf16>, vector<2x8x8xbf16>, vector<2x8x8xf32> -> vector<2x8x8xf32>
    "tpu.trace_stop"() : () -> ()
    %cst_35 = arith.constant dense<0xFF800000> : vector<2x8xf32>
    %89 = vector.multi_reduction <maximumf>, %88, %cst_35 [2] : vector<2x8x8xf32> to vector<2x8xf32>
    %90 = vector.shape_cast %89 : vector<2x8xf32> to vector<2x8x1xf32>
    %91 = vector.broadcast %90 : vector<2x8x1xf32> to vector<2x8x8xf32>
    %92 = arith.subf %88, %91 : vector<2x8x8xf32>
    %93 = math.exp %92 : vector<2x8x8xf32>
    %cst_36 = arith.constant dense<0.000000e+00> : vector<2x8xf32>
    %94 = vector.multi_reduction <add>, %93, %cst_36 [2] : vector<2x8x8xf32> to vector<2x8xf32>
    %95 = vector.shape_cast %94 : vector<2x8xf32> to vector<2x8x1xf32>
    %96 = tpu.reciprocal %95 {approx = true} : vector<2x8x1xf32> -> vector<2x8x1xf32>
    %97 = vector.broadcast %96 : vector<2x8x1xf32> to vector<2x8x8xf32>
    %98 = arith.mulf %93, %97 : vector<2x8x8xf32>
    %99 = arith.truncf %98 : vector<2x8x8xf32> to vector<2x8x8xbf16>
    %100 = vector.extract_strided_slice %40 {offsets = [0, 0, 16], sizes = [2, 8, 8], strides = [1, 1, 1]} : vector<2x8x32xbf16> to vector<2x8x8xbf16>
    "tpu.trace_start"() <{level = 10 : i32, message = "bqk,bkd->bqd"}> : () -> ()
    %cst_37 = arith.constant dense<0.000000e+00> : vector<2x8x8xf32>
    %101 = tpu.matmul %99, %100, %cst_37 {dimension_numbers = #tpu.dot_dimension_numbers<[2], [1], [1], [2], [0, 0, 0, 1, 1, 2], [0], [0]>} : vector<2x8x8xbf16>, vector<2x8x8xbf16>, vector<2x8x8xf32> -> vector<2x8x8xf32>
    "tpu.trace_stop"() : () -> ()
    %102 = vector.shape_cast %101 : vector<2x8x8xf32> to vector<16x8xf32>
    %103 = arith.truncf %102 : vector<16x8xf32> to vector<16x8xbf16>
    %c0_38 = arith.constant 0 : index
    %c16 = arith.constant 16 : index
    %c0_39 = arith.constant 0 : index
    %104 = vector.load %arg6[%c0_38, %c16, %c0_39] : memref<1x32x32xbf16, #tpu.memory_space<vmem>>, vector<1x8x32xbf16>
    %105 = vector.shape_cast %104 : vector<1x8x32xbf16> to vector<8x32xbf16>
    %cst_40 = arith.constant dense<0.000000e+00> : vector<16x32xf32>
    %106 = tpu.matmul %103, %105, %cst_40 {dimension_numbers = #tpu.dot_dimension_numbers<[1], [0], [0], [1], [0, 0, 1, 1], [], []>} : vector<16x8xbf16>, vector<8x32xbf16>, vector<16x32xf32> -> vector<16x32xf32>
    %107 = arith.addf %85, %106 : vector<16x32xf32>
    %108 = vector.extract_strided_slice %36 {offsets = [0, 0, 24], sizes = [2, 8, 8], strides = [1, 1, 1]} : vector<2x8x32xbf16> to vector<2x8x8xbf16>
    %109 = vector.extract_strided_slice %38 {offsets = [0, 0, 24], sizes = [2, 8, 8], strides = [1, 1, 1]} : vector<2x8x32xbf16> to vector<2x8x8xbf16>
    "tpu.trace_start"() <{level = 10 : i32, message = "bqd,bkd->bqk"}> : () -> ()
    %cst_41 = arith.constant dense<0.000000e+00> : vector<2x8x8xf32>
    %110 = tpu.matmul %108, %109, %cst_41 {dimension_numbers = #tpu.dot_dimension_numbers<[2], [2], [1], [1], [0, 0, 0, 1, 1, 1], [0], [0]>} : vector<2x8x8xbf16>, vector<2x8x8xbf16>, vector<2x8x8xf32> -> vector<2x8x8xf32>
    "tpu.trace_stop"() : () -> ()
    %cst_42 = arith.constant dense<0xFF800000> : vector<2x8xf32>
    %111 = vector.multi_reduction <maximumf>, %110, %cst_42 [2] : vector<2x8x8xf32> to vector<2x8xf32>
    %112 = vector.shape_cast %111 : vector<2x8xf32> to vector<2x8x1xf32>
    %113 = vector.broadcast %112 : vector<2x8x1xf32> to vector<2x8x8xf32>
    %114 = arith.subf %110, %113 : vector<2x8x8xf32>
    %115 = math.exp %114 : vector<2x8x8xf32>
    %cst_43 = arith.constant dense<0.000000e+00> : vector<2x8xf32>
    %116 = vector.multi_reduction <add>, %115, %cst_43 [2] : vector<2x8x8xf32> to vector<2x8xf32>
    %117 = vector.shape_cast %116 : vector<2x8xf32> to vector<2x8x1xf32>
    %118 = tpu.reciprocal %117 {approx = true} : vector<2x8x1xf32> -> vector<2x8x1xf32>
    %119 = vector.broadcast %118 : vector<2x8x1xf32> to vector<2x8x8xf32>
    %120 = arith.mulf %115, %119 : vector<2x8x8xf32>
    %121 = arith.truncf %120 : vector<2x8x8xf32> to vector<2x8x8xbf16>
    %122 = vector.extract_strided_slice %40 {offsets = [0, 0, 24], sizes = [2, 8, 8], strides = [1, 1, 1]} : vector<2x8x32xbf16> to vector<2x8x8xbf16>
    "tpu.trace_start"() <{level = 10 : i32, message = "bqk,bkd->bqd"}> : () -> ()
    %cst_44 = arith.constant dense<0.000000e+00> : vector<2x8x8xf32>
    %123 = tpu.matmul %121, %122, %cst_44 {dimension_numbers = #tpu.dot_dimension_numbers<[2], [1], [1], [2], [0, 0, 0, 1, 1, 2], [0], [0]>} : vector<2x8x8xbf16>, vector<2x8x8xbf16>, vector<2x8x8xf32> -> vector<2x8x8xf32>
    "tpu.trace_stop"() : () -> ()
    %124 = vector.shape_cast %123 : vector<2x8x8xf32> to vector<16x8xf32>
    %125 = arith.truncf %124 : vector<16x8xf32> to vector<16x8xbf16>
    %c0_45 = arith.constant 0 : index
    %c24 = arith.constant 24 : index
    %c0_46 = arith.constant 0 : index
    %126 = vector.load %arg6[%c0_45, %c24, %c0_46] : memref<1x32x32xbf16, #tpu.memory_space<vmem>>, vector<1x8x32xbf16>
    %127 = vector.shape_cast %126 : vector<1x8x32xbf16> to vector<8x32xbf16>
    %cst_47 = arith.constant dense<0.000000e+00> : vector<16x32xf32>
    %128 = tpu.matmul %125, %127, %cst_47 {dimension_numbers = #tpu.dot_dimension_numbers<[1], [0], [0], [1], [0, 0, 1, 1], [], []>} : vector<16x8xbf16>, vector<8x32xbf16>, vector<16x32xf32> -> vector<16x32xf32>
    %129 = arith.addf %107, %128 : vector<16x32xf32>
    %130 = vector.broadcast %9 : vector<1x32xf32> to vector<16x32xf32>
    %131 = arith.addf %129, %130 : vector<16x32xf32>
    %132 = arith.addf %16, %131 : vector<16x32xf32>
    %cst_48 = arith.constant dense<0.000000e+00> : vector<16xf32>
    %133 = vector.multi_reduction <add>, %132, %cst_48 [1] : vector<16x32xf32> to vector<16xf32>
    %134 = vector.shape_cast %133 : vector<16xf32> to vector<16x1xf32>
    %cst_49 = arith.constant 3.200000e+01 : f32
    %135 = vector.broadcast %cst_49 : f32 to vector<16x1xf32>
    %136 = arith.divf %134, %135 : vector<16x1xf32>
    %137 = vector.broadcast %136 : vector<16x1xf32> to vector<16x32xf32>
    %138 = arith.subf %132, %137 : vector<16x32xf32>
    %139 = arith.mulf %138, %138 : vector<16x32xf32>
    %cst_50 = arith.constant dense<0.000000e+00> : vector<16xf32>
    %140 = vector.multi_reduction <add>, %139, %cst_50 [1] : vector<16x32xf32> to vector<16xf32>
    %141 = vector.shape_cast %140 : vector<16xf32> to vector<16x1xf32>
    %cst_51 = arith.constant 3.200000e+01 : f32
    %142 = vector.broadcast %cst_51 : f32 to vector<16x1xf32>
    %143 = arith.divf %141, %142 : vector<16x1xf32>
    %144 = vector.broadcast %136 : vector<16x1xf32> to vector<16x32xf32>
    %145 = arith.subf %132, %144 : vector<16x32xf32>
    %cst_52 = arith.constant 9.99999974E-6 : f32
    %146 = vector.broadcast %cst_52 : f32 to vector<16x1xf32>
    %147 = arith.addf %143, %146 : vector<16x1xf32>
    %148 = math.rsqrt %147 : vector<16x1xf32>
    %149 = vector.broadcast %148 : vector<16x1xf32> to vector<16x32xf32>
    %150 = arith.mulf %145, %149 : vector<16x32xf32>
    %151 = vector.broadcast %12 : vector<1x32xf32> to vector<16x32xf32>
    %152 = arith.mulf %150, %151 : vector<16x32xf32>
    %153 = vector.broadcast %13 : vector<1x32xf32> to vector<16x32xf32>
    %154 = arith.addf %152, %153 : vector<16x32xf32>
    %155 = arith.truncf %154 : vector<16x32xf32> to vector<16x32xbf16>
    %c0_53 = arith.constant 0 : index
    %c0_54 = arith.constant 0 : index
    %c0_55 = arith.constant 0 : index
    %156 = vector.load %arg7[%c0_53, %c0_54, %c0_55] : memref<1x32x128xbf16, #tpu.memory_space<vmem>>, vector<1x32x128xbf16>
    %157 = vector.shape_cast %156 : vector<1x32x128xbf16> to vector<32x128xbf16>
    %cst_56 = arith.constant dense<0.000000e+00> : vector<16x128xf32>
    %158 = tpu.matmul %155, %157, %cst_56 {dimension_numbers = #tpu.dot_dimension_numbers<[1], [0], [0], [1], [0, 0, 1, 1], [], []>} : vector<16x32xbf16>, vector<32x128xbf16>, vector<16x128xf32> -> vector<16x128xf32>
    %159 = vector.broadcast %10 : vector<1x128xf32> to vector<16x128xf32>
    %160 = arith.addf %158, %159 : vector<16x128xf32>
    %cst_57 = arith.constant 0.000000e+00 : f32
    %161 = vector.broadcast %cst_57 : f32 to vector<16x128xf32>
    %162 = arith.maximumf %160, %161 : vector<16x128xf32>
    %163 = arith.truncf %162 : vector<16x128xf32> to vector<16x128xbf16>
    %c0_58 = arith.constant 0 : index
    %c0_59 = arith.constant 0 : index
    %c0_60 = arith.constant 0 : index
    %164 = vector.load %arg8[%c0_58, %c0_59, %c0_60] : memref<1x128x32xbf16, #tpu.memory_space<vmem>>, vector<1x128x32xbf16>
    %165 = vector.shape_cast %164 : vector<1x128x32xbf16> to vector<128x32xbf16>
    %cst_61 = arith.constant dense<0.000000e+00> : vector<16x32xf32>
    %166 = tpu.matmul %163, %165, %cst_61 {dimension_numbers = #tpu.dot_dimension_numbers<[1], [0], [0], [1], [0, 0, 1, 1], [], []>} : vector<16x128xbf16>, vector<128x32xbf16>, vector<16x32xf32> -> vector<16x32xf32>
    %167 = vector.broadcast %11 : vector<1x32xf32> to vector<16x32xf32>
    %168 = arith.addf %166, %167 : vector<16x32xf32>
    %169 = arith.addf %154, %168 : vector<16x32xf32>
    %cst_62 = arith.constant dense<0.000000e+00> : vector<16xf32>
    %170 = vector.multi_reduction <add>, %169, %cst_62 [1] : vector<16x32xf32> to vector<16xf32>
    %171 = vector.shape_cast %170 : vector<16xf32> to vector<16x1xf32>
    %cst_63 = arith.constant 3.200000e+01 : f32
    %172 = vector.broadcast %cst_63 : f32 to vector<16x1xf32>
    %173 = arith.divf %171, %172 : vector<16x1xf32>
    %174 = vector.broadcast %173 : vector<16x1xf32> to vector<16x32xf32>
    %175 = arith.subf %169, %174 : vector<16x32xf32>
    %176 = arith.mulf %175, %175 : vector<16x32xf32>
    %cst_64 = arith.constant dense<0.000000e+00> : vector<16xf32>
    %177 = vector.multi_reduction <add>, %176, %cst_64 [1] : vector<16x32xf32> to vector<16xf32>
    %178 = vector.shape_cast %177 : vector<16xf32> to vector<16x1xf32>
    %cst_65 = arith.constant 3.200000e+01 : f32
    %179 = vector.broadcast %cst_65 : f32 to vector<16x1xf32>
    %180 = arith.divf %178, %179 : vector<16x1xf32>
    %181 = vector.broadcast %173 : vector<16x1xf32> to vector<16x32xf32>
    %182 = arith.subf %169, %181 : vector<16x32xf32>
    %cst_66 = arith.constant 9.99999974E-6 : f32
    %183 = vector.broadcast %cst_66 : f32 to vector<16x1xf32>
    %184 = arith.addf %180, %183 : vector<16x1xf32>
    %185 = math.rsqrt %184 : vector<16x1xf32>
    %186 = vector.broadcast %185 : vector<16x1xf32> to vector<16x32xf32>
    %187 = arith.mulf %182, %186 : vector<16x32xf32>
    %188 = vector.broadcast %14 : vector<1x32xf32> to vector<16x32xf32>
    %189 = arith.mulf %187, %188 : vector<16x32xf32>
    %190 = vector.broadcast %15 : vector<1x32xf32> to vector<16x32xf32>
    %191 = arith.addf %189, %190 : vector<16x32xf32>
    %192 = vector.shape_cast %191 : vector<16x32xf32> to vector<2x8x32xf32>
    %c1_i32 = arith.constant 1 : i32
    %193 = arith.cmpi slt, %arg1, %c1_i32 : i32
    %194 = arith.extui %193 : i1 to i32
    %c0_i32_67 = arith.constant 0 : i32
    %195 = arith.cmpi ne, %194, %c0_i32_67 : i32
    scf.if %195 {
      %c0_70 = arith.constant 0 : index
      %c0_71 = arith.constant 0 : index
      %c0_72 = arith.constant 0 : index
      %199 = vector.load %arg11[%c0_70, %c0_71, %c0_72] : memref<2x8x32xf32, #tpu.memory_space<vmem>>, vector<2x8x32xf32>
      tpu.vector_store %arg11[%c0_70, %c0_71, %c0_72], %192 {strides = array<i32>} : memref<2x8x32xf32, #tpu.memory_space<vmem>>, vector<2x8x32xf32>,
    } else {
    }
    %c1_i32_68 = arith.constant 1 : i32
    %196 = arith.cmpi eq, %arg1, %c1_i32_68 : i32
    %197 = arith.extui %196 : i1 to i32
    %c0_i32_69 = arith.constant 0 : i32
    %198 = arith.cmpi ne, %197, %c0_i32_69 : i32
    scf.if %198 {
      %c0_70 = arith.constant 0 : index
      %c0_71 = arith.constant 0 : index
      %c0_72 = arith.constant 0 : index
      %199 = vector.load %arg10[%c0_70, %c0_71, %c0_72] : memref<2x8x32xf32, #tpu.memory_space<vmem>>, vector<2x8x32xf32>
      tpu.vector_store %arg10[%c0_70, %c0_71, %c0_72], %192 {strides = array<i32>} : memref<2x8x32xf32, #tpu.memory_space<vmem>>, vector<2x8x32xf32>,
    } else {
    }
    return
  }
  func.func @transform_0(%arg0: i32, %arg1: i32) -> (i32, i32, i32) {
    %c0_i32 = arith.constant 0 : i32
    %c0_i32_0 = arith.constant 0 : i32
    %c0_i32_1 = arith.constant 0 : i32
    return %arg0, %c0_i32, %c0_i32_0 : i32, i32, i32
  }
  func.func @transform_1(%arg0: i32, %arg1: i32) -> (i32, i32, i32) {
    %c0_i32 = arith.constant 0 : i32
    %c0_i32_0 = arith.constant 0 : i32
    %c0_i32_1 = arith.constant 0 : i32
    return %arg1, %c0_i32, %c0_i32_0 : i32, i32, i32
  }
  func.func @transform_2(%arg0: i32, %arg1: i32) -> (i32, i32, i32) {
    %c0_i32 = arith.constant 0 : i32
    %c0_i32_0 = arith.constant 0 : i32
    %c0_i32_1 = arith.constant 0 : i32
    return %arg1, %c0_i32, %c0_i32_0 : i32, i32, i32
  }
  func.func @transform_3(%arg0: i32, %arg1: i32) -> (i32, i32, i32) {
    %c0_i32 = arith.constant 0 : i32
    %c0_i32_0 = arith.constant 0 : i32
    %c0_i32_1 = arith.constant 0 : i32
    return %arg1, %c0_i32, %c0_i32_0 : i32, i32, i32
  }
  func.func @transform_4(%arg0: i32, %arg1: i32) -> (i32, i32, i32) {
    %c0_i32 = arith.constant 0 : i32
    %c0_i32_0 = arith.constant 0 : i32
    %c0_i32_1 = arith.constant 0 : i32
    return %arg1, %c0_i32, %c0_i32_0 : i32, i32, i32
  }
  func.func @transform_5(%arg0: i32, %arg1: i32) -> (i32, i32, i32) {
    %c0_i32 = arith.constant 0 : i32
    %c0_i32_0 = arith.constant 0 : i32
    %c0_i32_1 = arith.constant 0 : i32
    return %arg1, %c0_i32, %c0_i32_0 : i32, i32, i32
  }
  func.func @transform_6(%arg0: i32, %arg1: i32) -> (i32, i32, i32) {
    %c0_i32 = arith.constant 0 : i32
    %c0_i32_0 = arith.constant 0 : i32
    %c0_i32_1 = arith.constant 0 : i32
    return %arg1, %c0_i32, %c0_i32_0 : i32, i32, i32
  }
  func.func @transform_7(%arg0: i32, %arg1: i32) -> (i32, i32, i32) {
    %c0_i32 = arith.constant 0 : i32
    %c0_i32_0 = arith.constant 0 : i32
    %c0_i32_1 = arith.constant 0 : i32
    return %arg1, %c0_i32, %c0_i32_0 : i32, i32, i32
  }
  func.func @transform_8(%arg0: i32, %arg1: i32) -> (i32, i32, i32) {
    %c0_i32 = arith.constant 0 : i32
    %c0_i32_0 = arith.constant 0 : i32
    %c0_i32_1 = arith.constant 0 : i32
    return %arg0, %c0_i32, %c0_i32_0 : i32, i32, i32
  }
}

</mosaic_0001>

<llo_original>
// kernel: tpu_custom_call.1
$region0: #{tpu_custom_call.1}
  #allocation0 [shape = 'u32[]', space=smem, size = 0x4, offset = 0x4, fixed_abs, tag = 'smem constant byte address 0x4 - core index']
  #allocation1 [shape = 'u32[144,128]{1,0:T(1,128)}', space=vmem, size = 0x12000, scoped, tag = 'internal scratch']
  #allocation2 [shape = 'f32[2,8,32]{2,1,0:T(8,128)}', space=vmem, size = 0x2000, scoped, tag = 'scratch operand']
  %s0 = inlined_call_operand.hbm [shape: f32[2,8,32], index: 0, kind: input, shape index: {}]
  %s1 = inlined_call_operand.vmem [shape: bf16[2,32,32], index: 1, kind: input, shape index: {}]
  %s2 = inlined_call_operand.vmem [shape: bf16[2,32,32], index: 2, kind: input, shape index: {}]
  %s3 = inlined_call_operand.vmem [shape: bf16[2,32,32], index: 3, kind: input, shape index: {}]
  %s4 = inlined_call_operand.vmem [shape: bf16[2,32,32], index: 4, kind: input, shape index: {}]
  %s5 = inlined_call_operand.vmem [shape: bf16[2,32,128], index: 5, kind: input, shape index: {}]
  %s6 = inlined_call_operand.vmem [shape: bf16[2,128,32], index: 6, kind: input, shape index: {}]
  %s7 = inlined_call_operand.hbm [shape: f32[2,16,128], index: 7, kind: input, shape index: {}]
  %s8 = inlined_call_operand.hbm [shape: f32[2,8,32], index: 8, kind: output, shape index: {}]
  %s9 = sld [smem:[#allocation0]]
  $region85: #{tpu_custom_call.1} parent=0
    _
  %s11 = ssub.s32 1, %s9
  %s12 = scalar_select 0, %s11, %s9
  $region1: #{tpu_custom_call.1} parent=0
    #allocation3 [shape = 'u8[8192]{0}', space=vmem, size = 0x2000, scoped, tag = 'input window, operand 0, single buffered']
    #allocation4 [shape = 's32[2]{0}', space=sflag, size = 0x8, scoped, tag = 'scoped memory for tpu_custom_call.1']
    #allocation5 [shape = 's32[2]{0}', space=sflag, size = 0x8, scoped, tag = 'scoped memory for tpu_custom_call.1']
    #allocation6 [shape = 'u8[16384]{0}', space=vmem, size = 0x4000, scoped, tag = 'input window, operand 7']
    #allocation7 [shape = 's32[2]{0}', space=sflag, size = 0x8, scoped, tag = 'scoped memory for tpu_custom_call.1']
    #allocation8 [shape = 'u8[8192]{0}', space=vmem, size = 0x2000, scoped, tag = 'output window, operand 0, single buffered']
    %13 = vsyncpa [#allocation4], 0
    %14 = vsyncpa [#allocation7], 0
    %s15 = scalar_lea.sflag [#allocation7], 1
    %16 = vsyncpa %s15, 0
    %17 = vsyncpa [#allocation5], 0
    loop: start=0, step=1, limit=4
    $region2: #{tpu_custom_call.1} parent=1 // loop_pre_header
      _
    $region3: #{tpu_custom_call.1} parent=1 // loop_header
      %s19 = sphi 0, %s23
      %p20 = scmp.ge.s32.totalorder %s19, 4
      %s26 = sphi 0, %s38
      %s27 = sphi 0, %s34
      %s28 = sphi 0, %s26
      %s29 = sphi 0, %s27
      %s30 = sphi 0, %s28
      %s31 = sphi 0, %s29
      %s41 = sphi 0, %s43
      %s44 = sphi 0, %s41
      %s45 = sphi 0, %s44
      %s61 = sphi 0, %s45
      %s67 = sphi 0, %s69
      %s70 = sphi 0, %s67
      %s71 = sphi 0, %s70
      %s87 = sphi 0, %s71
      %s93 = sphi 0, %s95
      %s96 = sphi 0, %s93
      %s97 = sphi 0, %s96
      %s113 = sphi 0, %s97
      %s119 = sphi 0, %s121
      %s122 = sphi 0, %s119
      %s123 = sphi 0, %s122
      %s139 = sphi 0, %s123
      %s145 = sphi 0, %s147
      %s148 = sphi 0, %s145
      %s149 = sphi 0, %s148
      %s165 = sphi 0, %s149
      %s171 = sphi 0, %s173
      %s174 = sphi 0, %s171
      %s175 = sphi 0, %s174
      %s191 = sphi 0, %s175
      %s197 = sphi 0, %s199
      %s200 = sphi 0, %s197
      %s201 = sphi 0, %s200
      %s217 = sphi 0, %s201
      %s223 = sphi 0, %s225
      %s226 = sphi 0, %s223
      %s227 = sphi 0, %s226
      %s243 = sphi 0, %s227
      %s249 = sphi 0, %s251
      %s252 = sphi 0, %s249
      %s253 = sphi 0, %s252
      %s269 = sphi 0, %s253
    $region4: #{tpu_custom_call.1} parent=1 // loop_header_branch
      %22 = sbr.rel (%p20) target = $region8
    $region5: #{tpu_custom_call.1} parent=1 // loop_body
      %s24 = ssub.s32 %s19, 1
      %s25 = ssub.s32 %s19, 2
      %s32 = sadd.s32 1, %s27
      %p33 = scmp.ge.s32.totalorder %s32, 2
      %s34 = scalar_select %p33, 0, %s32
      %s35 = sadd.s32 1, %s26
      %s36 = scalar_select %p33, %s35, %s26
      %p37 = scmp.ge.s32.totalorder %s36, 1
      %s38 = scalar_select %p37, 0, %s36
      %s39 = ssub.s32 %s26, %s38
      %p40 = scmp.eq.s32.totalorder %s39, 0
      %s42 = sadd.s32 %s41, 1
      %s43 = scalar_select %p40, %s41, %s42
      %p46 = pneg %p40
      %p47 = scmp.eq.s32.totalorder %s19, 1
      %p48 = por %p46, %p47
      %p49 = scmp.ne.s32.totalorder %s41, %s44
      %p50 = scmp.eq.s32.totalorder %s19, 0
      %p51 = por %p49, %p50
      %p52 = scmp.ne.s32.totalorder %s41, %s44
      %p53 = scmp.eq.s32.totalorder %s24, 1
      %p54 = por %p52, %p53
      %p55 = scmp.ne.s32.totalorder %s44, %s45
      %p56 = scmp.eq.s32.totalorder %s24, 0
      %p57 = por %p55, %p56
      %p58 = scmp.ne.s32.totalorder %s44, %s45
      %p59 = scmp.eq.s32.totalorder %s25, 1
      %p60 = por %p58, %p59
      %p62 = scmp.ne.s32.totalorder %s45, %s61
      %p63 = scmp.eq.s32.totalorder %s25, 0
      %p64 = por %p62, %p63
      %s65 = ssub.s32 %s27, %s34
      %p66 = scmp.eq.s32.totalorder %s65, 0
      %s68 = sadd.s32 %s67, 1
      %s69 = scalar_select %p66, %s67, %s68
      %p72 = pneg %p66
      %p73 = scmp.eq.s32.totalorder %s19, 1
      %p74 = por %p72, %p73
      %p75 = scmp.ne.s32.totalorder %s67, %s70
      %p76 = scmp.eq.s32.totalorder %s19, 0
      %p77 = por %p75, %p76
      %p78 = scmp.ne.s32.totalorder %s67, %s70
      %p79 = scmp.eq.s32.totalorder %s24, 1
      %p80 = por %p78, %p79
      %p81 = scmp.ne.s32.totalorder %s70, %s71
      %p82 = scmp.eq.s32.totalorder %s24, 0
      %p83 = por %p81, %p82
      %p84 = scmp.ne.s32.totalorder %s70, %s71
      %p85 = scmp.eq.s32.totalorder %s25, 1
      %p86 = por %p84, %p85
      %p88 = scmp.ne.s32.totalorder %s71, %s87
      %p89 = scmp.eq.s32.totalorder %s25, 0
      %p90 = por %p88, %p89
      %s91 = ssub.s32 %s27, %s34
      %p92 = scmp.eq.s32.totalorder %s91, 0
      %s94 = sadd.s32 %s93, 1
      %s95 = scalar_select %p92, %s93, %s94
      %p98 = pneg %p92
      %p99 = scmp.eq.s32.totalorder %s19, 1
      %p100 = por %p98, %p99
      %p101 = scmp.ne.s32.totalorder %s93, %s96
      %p102 = scmp.eq.s32.totalorder %s19, 0
      %p103 = por %p101, %p102
      %p104 = scmp.ne.s32.totalorder %s93, %s96
      %p105 = scmp.eq.s32.totalorder %s24, 1
      %p106 = por %p104, %p105
      %p107 = scmp.ne.s32.totalorder %s96, %s97
      %p108 = scmp.eq.s32.totalorder %s24, 0
      %p109 = por %p107, %p108
      %p110 = scmp.ne.s32.totalorder %s96, %s97
      %p111 = scmp.eq.s32.totalorder %s25, 1
      %p112 = por %p110, %p111
      %p114 = scmp.ne.s32.totalorder %s97, %s113
      %p115 = scmp.eq.s32.totalorder %s25, 0
      %p116 = por %p114, %p115
      %s117 = ssub.s32 %s27, %s34
      %p118 = scmp.eq.s32.totalorder %s117, 0
      %s120 = sadd.s32 %s119, 1
      %s121 = scalar_select %p118, %s119, %s120
      %p124 = pneg %p118
      %p125 = scmp.eq.s32.totalorder %s19, 1
      %p126 = por %p124, %p125
      %p127 = scmp.ne.s32.totalorder %s119, %s122
      %p128 = scmp.eq.s32.totalorder %s19, 0
      %p129 = por %p127, %p128
      %p130 = scmp.ne.s32.totalorder %s119, %s122
      %p131 = scmp.eq.s32.totalorder %s24, 1
      %p132 = por %p130, %p131
      %p133 = scmp.ne.s32.totalorder %s122, %s123
      %p134 = scmp.eq.s32.totalorder %s24, 0
      %p135 = por %p133, %p134
      %p136 = scmp.ne.s32.totalorder %s122, %s123
      %p137 = scmp.eq.s32.totalorder %s25, 1
      %p138 = por %p136, %p137
      %p140 = scmp.ne.s32.totalorder %s123, %s139
      %p141 = scmp.eq.s32.totalorder %s25, 0
      %p142 = por %p140, %p141
      %s143 = ssub.s32 %s27, %s34
      %p144 = scmp.eq.s32.totalorder %s143, 0
      %s146 = sadd.s32 %s145, 1
      %s147 = scalar_select %p144, %s145, %s146
      %p150 = pneg %p144
      %p151 = scmp.eq.s32.totalorder %s19, 1
      %p152 = por %p150, %p151
      %p153 = scmp.ne.s32.totalorder %s145, %s148
      %p154 = scmp.eq.s32.totalorder %s19, 0
      %p155 = por %p153, %p154
      %p156 = scmp.ne.s32.totalorder %s145, %s148
      %p157 = scmp.eq.s32.totalorder %s24, 1
      %p158 = por %p156, %p157
      %p159 = scmp.ne.s32.totalorder %s148, %s149
      %p160 = scmp.eq.s32.totalorder %s24, 0
      %p161 = por %p159, %p160
      %p162 = scmp.ne.s32.totalorder %s148, %s149
      %p163 = scmp.eq.s32.totalorder %s25, 1
      %p164 = por %p162, %p163
      %p166 = scmp.ne.s32.totalorder %s149, %s165
      %p167 = scmp.eq.s32.totalorder %s25, 0
      %p168 = por %p166, %p167
      %s169 = ssub.s32 %s27, %s34
      %p170 = scmp.eq.s32.totalorder %s169, 0
      %s172 = sadd.s32 %s171, 1
      %s173 = scalar_select %p170, %s171, %s172
      %p176 = pneg %p170
      %p177 = scmp.eq.s32.totalorder %s19, 1
      %p178 = por %p176, %p177
      %p179 = scmp.ne.s32.totalorder %s171, %s174
      %p180 = scmp.eq.s32.totalorder %s19, 0
      %p181 = por %p179, %p180
      %p182 = scmp.ne.s32.totalorder %s171, %s174
      %p183 = scmp.eq.s32.totalorder %s24, 1
      %p184 = por %p182, %p183
      %p185 = scmp.ne.s32.totalorder %s174, %s175
      %p186 = scmp.eq.s32.totalorder %s24, 0
      %p187 = por %p185, %p186
      %p188 = scmp.ne.s32.totalorder %s174, %s175
      %p189 = scmp.eq.s32.totalorder %s25, 1
      %p190 = por %p188, %p189
      %p192 = scmp.ne.s32.totalorder %s175, %s191
      %p193 = scmp.eq.s32.totalorder %s25, 0
      %p194 = por %p192, %p193
      %s195 = ssub.s32 %s27, %s34
      %p196 = scmp.eq.s32.totalorder %s195, 0
      %s198 = sadd.s32 %s197, 1
      %s199 = scalar_select %p196, %s197, %s198
      %p202 = pneg %p196
      %p203 = scmp.eq.s32.totalorder %s19, 1
      %p204 = por %p202, %p203
      %p205 = scmp.ne.s32.totalorder %s197, %s200
      %p206 = scmp.eq.s32.totalorder %s19, 0
      %p207 = por %p205, %p206
      %p208 = scmp.ne.s32.totalorder %s197, %s200
      %p209 = scmp.eq.s32.totalorder %s24, 1
      %p210 = por %p208, %p209
      %p211 = scmp.ne.s32.totalorder %s200, %s201
      %p212 = scmp.eq.s32.totalorder %s24, 0
      %p213 = por %p211, %p212
      %p214 = scmp.ne.s32.totalorder %s200, %s201
      %p215 = scmp.eq.s32.totalorder %s25, 1
      %p216 = por %p214, %p215
      %p218 = scmp.ne.s32.totalorder %s201, %s217
      %p219 = scmp.eq.s32.totalorder %s25, 0
      %p220 = por %p218, %p219
      %s221 = ssub.s32 %s27, %s34
      %p222 = scmp.eq.s32.totalorder %s221, 0
      %s224 = sadd.s32 %s223, 1
      %s225 = scalar_select %p222, %s223, %s224
      %p228 = pneg %p222
      %p229 = scmp.eq.s32.totalorder %s19, 1
      %p230 = por %p228, %p229
      %p231 = scmp.ne.s32.totalorder %s223, %s226
      %p232 = scmp.eq.s32.totalorder %s19, 0
      %p233 = por %p231, %p232
      %p234 = scmp.ne.s32.totalorder %s223, %s226
      %p235 = scmp.eq.s32.totalorder %s24, 1
      %p236 = por %p234, %p235
      %p237 = scmp.ne.s32.totalorder %s226, %s227
      %p238 = scmp.eq.s32.totalorder %s24, 0
      %p239 = por %p237, %p238
      %p240 = scmp.ne.s32.totalorder %s226, %s227
      %p241 = scmp.eq.s32.totalorder %s25, 1
      %p242 = por %p240, %p241
      %p244 = scmp.ne.s32.totalorder %s227, %s243
      %p245 = scmp.eq.s32.totalorder %s25, 0
      %p246 = por %p244, %p245
      %s247 = ssub.s32 %s26, %s38
      %p248 = scmp.eq.s32.totalorder %s247, 0
      %s250 = sadd.s32 %s249, 1
      %s251 = scalar_select %p248, %s249, %s250
      %p254 = pneg %p248
      %p255 = scmp.eq.s32.totalorder %s19, 1
      %p256 = por %p254, %p255
      %p257 = scmp.ne.s32.totalorder %s249, %s252
      %p258 = scmp.eq.s32.totalorder %s19, 0
      %p259 = por %p257, %p258
      %p260 = scmp.ne.s32.totalorder %s249, %s252
      %p261 = scmp.eq.s32.totalorder %s24, 1
      %p262 = por %p260, %p261
      %p263 = scmp.ne.s32.totalorder %s252, %s253
      %p264 = scmp.eq.s32.totalorder %s24, 0
      %p265 = por %p263, %p264
      %p266 = scmp.ne.s32.totalorder %s252, %s253
      %p267 = scmp.eq.s32.totalorder %s25, 1
      %p268 = por %p266, %p267
      %p270 = scmp.ne.s32.totalorder %s253, %s269
      %p271 = scmp.eq.s32.totalorder %s25, 0
      %p272 = por %p270, %p271
      %p273 = scmp.le.s32.totalorder 1, %s19
      %p274 = scmp.lt.s32.totalorder %s19, 3
      %p275 = pnand %p273, %p274
      %p276 = pneg %p275
      // Predicated region
      $region9: #{tpu_custom_call.1} parent=5 // pred_check
        _
      $region10: #{tpu_custom_call.1} parent=5 // pred_check_branch
        %278 = sbr.rel (%p275) target = $region12
      $region11: #{tpu_custom_call.1} parent=5 // pred_region
        %s279 = ssub.s32 %s19, 1
        // Predicated region
        $region13: #{tpu_custom_call.1} parent=11 // pred_check
          %p280 = pneg %p57
        $region14: #{tpu_custom_call.1} parent=11 // pred_check_branch
          %282 = sbr.rel (%p280) target = $region16
        $region15: #{tpu_custom_call.1} parent=11 // pred_region
          %s283 = smul.u32 2, %s28
          %s285 = ssub.s32 256, 256
          %286 = vsyncadd [#allocation4], %s285
          %s287 = smul.addr %s283, 128
          %s288 = scalar_lea.hbm %s0, %s287
          %s289 = sshll.u32 [#allocation3], 4
          %s290 = int_to_ptr.vmem [resolvable:$true] %s289
          %295 = dma.hbm_to_vmem [thread:$0]  %s288, 256, %s290, [#allocation4], 128, 128, 8
        $region16: #{tpu_custom_call.1} parent=11 // pred_fallthru
          _
      $region12: #{tpu_custom_call.1} parent=5 // pred_fallthru
        _
      %p296 = scmp.lt.s32.totalorder %s19, 2
      // Predicated region
      $region17: #{tpu_custom_call.1} parent=5 // pred_check
        %p297 = pneg %p296
      $region18: #{tpu_custom_call.1} parent=5 // pred_check_branch
        %299 = sbr.rel (%p297) target = $region20
      $region19: #{tpu_custom_call.1} parent=5 // pred_region
        // Predicated region
        $region21: #{tpu_custom_call.1} parent=19 // pred_check
          %p300 = pneg %p77
        $region22: #{tpu_custom_call.1} parent=19 // pred_check_branch
          %302 = sbr.rel (%p300) target = $region24
        $region23: #{tpu_custom_call.1} parent=19 // pred_region
          %p303 = scmp.lt.s32.totalorder %s27, 1
          %s304 = scalar_select %p303, %s27, 1
          %s305 = smul.addr %s304, 4
          %s306 = smul.addr %s305, 4
          %s307 = scalar_lea.vmem %s1, %s306
        $region24: #{tpu_custom_call.1} parent=19 // pred_fallthru
          _
        // Predicated region
        $region25: #{tpu_custom_call.1} parent=19 // pred_check
          %p308 = pneg %p103
        $region26: #{tpu_custom_call.1} parent=19 // pred_check_branch
          %310 = sbr.rel (%p308) target = $region28
        $region27: #{tpu_custom_call.1} parent=19 // pred_region
          %p311 = scmp.lt.s32.totalorder %s27, 1
          %s312 = scalar_select %p311, %s27, 1
          %s313 = smul.addr %s312, 4
          %s314 = smul.addr %s313, 4
          %s315 = scalar_lea.vmem %s2, %s314
        $region28: #{tpu_custom_call.1} parent=19 // pred_fallthru
          _
        // Predicated region
        $region29: #{tpu_custom_call.1} parent=19 // pred_check
          %p316 = pneg %p129
        $region30: #{tpu_custom_call.1} parent=19 // pred_check_branch
          %318 = sbr.rel (%p316) target = $region32
        $region31: #{tpu_custom_call.1} parent=19 // pred_region
          %p319 = scmp.lt.s32.totalorder %s27, 1
          %s320 = scalar_select %p319, %s27, 1
          %s321 = smul.addr %s320, 4
          %s322 = smul.addr %s321, 4
          %s323 = scalar_lea.vmem %s3, %s322
        $region32: #{tpu_custom_call.1} parent=19 // pred_fallthru
          _
        // Predicated region
        $region33: #{tpu_custom_call.1} parent=19 // pred_check
          %p324 = pneg %p155
        $region34: #{tpu_custom_call.1} parent=19 // pred_check_branch
          %326 = sbr.rel (%p324) target = $region36
        $region35: #{tpu_custom_call.1} parent=19 // pred_region
          %p327 = scmp.lt.s32.totalorder %s27, 1
          %s328 = scalar_select %p327, %s27, 1
          %s329 = smul.addr %s328, 4
          %s330 = smul.addr %s329, 4
          %s331 = scalar_lea.vmem %s4, %s330
        $region36: #{tpu_custom_call.1} parent=19 // pred_fallthru
          _
        // Predicated region
        $region37: #{tpu_custom_call.1} parent=19 // pred_check
          %p332 = pneg %p181
        $region38: #{tpu_custom_call.1} parent=19 // pred_check_branch
          %334 = sbr.rel (%p332) target = $region40
        $region39: #{tpu_custom_call.1} parent=19 // pred_region
          %p335 = scmp.lt.s32.totalorder %s27, 1
          %s336 = scalar_select %p335, %s27, 1
          %s337 = smul.addr %s336, 4
          %s338 = smul.addr %s337, 4
          %s339 = scalar_lea.vmem %s5, %s338
        $region40: #{tpu_custom_call.1} parent=19 // pred_fallthru
          _
        // Predicated region
        $region41: #{tpu_custom_call.1} parent=19 // pred_check
          %p340 = pneg %p207
        $region42: #{tpu_custom_call.1} parent=19 // pred_check_branch
          %342 = sbr.rel (%p340) target = $region44
        $region43: #{tpu_custom_call.1} parent=19 // pred_region
          %p343 = scmp.lt.s32.totalorder %s27, 1
          %s344 = scalar_select %p343, %s27, 1
          %s345 = smul.addr %s344, 16
          %s346 = smul.addr %s345, 4
          %s347 = scalar_lea.vmem %s6, %s346
        $region44: #{tpu_custom_call.1} parent=19 // pred_fallthru
          _
        // Predicated region
        $region45: #{tpu_custom_call.1} parent=19 // pred_check
          %p348 = pneg %p233
        $region46: #{tpu_custom_call.1} parent=19 // pred_check_branch
          %350 = sbr.rel (%p348) target = $region48
        $region47: #{tpu_custom_call.1} parent=19 // pred_region
          %s351 = sand.u32 %s223, 1
          %s352 = scalar_lea.sflag [#allocation7], %s351
          %s353 = sand.u32 %s223, 1
          %s354 = smul.addr %s353, 16
          %s355 = scalar_lea.vmem [#allocation6], %s354
          %s357 = ssub.s32 256, 256
          %358 = vsyncadd %s352, %s357
          %s359 = smul.addr %s27, 2
          %s360 = smul.addr %s359, 128
          %s361 = scalar_lea.hbm %s7, %s360
          %s362 = sshll.u32 %s355, 4
          %s363 = int_to_ptr.vmem [resolvable:$true] %s362
          %368 = dma.hbm_to_vmem [thread:$0]  %s361, 256, %s363, %s352, 128, 128, 8
        $region48: #{tpu_custom_call.1} parent=19 // pred_fallthru
          _
      $region20: #{tpu_custom_call.1} parent=5 // pred_fallthru
        _
      %p369 = scmp.le.s32.totalorder 1, %s19
      %p370 = scmp.lt.s32.totalorder %s19, 3
      %p371 = pnand %p369, %p370
      %p372 = pneg %p371
      // Predicated region
      $region49: #{tpu_custom_call.1} parent=5 // pred_check
        _
      $region50: #{tpu_custom_call.1} parent=5 // pred_check_branch
        %374 = sbr.rel (%p371) target = $region52
      $region51: #{tpu_custom_call.1} parent=5 // pred_region
        %s375 = ssub.s32 %s19, 1
        // Predicated region
        $region53: #{tpu_custom_call.1} parent=51 // pred_check
          %p376 = pneg %p57
        $region54: #{tpu_custom_call.1} parent=51 // pred_check_branch
          %378 = sbr.rel (%p376) target = $region56
        $region55: #{tpu_custom_call.1} parent=51 // pred_region
          %379 = dma.done [#allocation4], 256
        $region56: #{tpu_custom_call.1} parent=51 // pred_fallthru
          _
        %s380 = sand.u32 %s226, 1
        %s381 = scalar_lea.sflag [#allocation7], %s380
        %s382 = sand.u32 %s226, 1
        %s383 = smul.addr %s382, 16
        %s384 = scalar_lea.vmem [#allocation6], %s383
        // Predicated region
        $region57: #{tpu_custom_call.1} parent=51 // pred_check
          %p385 = pneg %p239
        $region58: #{tpu_custom_call.1} parent=51 // pred_check_branch
          %387 = sbr.rel (%p385) target = $region60
        $region59: #{tpu_custom_call.1} parent=51 // pred_region
          %388 = dma.done %s381, 256
        $region60: #{tpu_custom_call.1} parent=51 // pred_fallthru
          _
        %p389 = pneg %p57
        %p390 = pneg %p54
        %p391 = scmp.lt.s32.totalorder %s29, 1
        %s392 = scalar_select %p391, %s29, 1
        %s393 = smul.addr %s392, 4
        %s394 = smul.addr %s393, 4
        %s395 = scalar_lea.vmem %s1, %s394
        %p396 = pneg %p83
        %p397 = pneg %p80
        %p398 = scmp.lt.s32.totalorder %s29, 1
        %s399 = scalar_select %p398, %s29, 1
        %s400 = smul.addr %s399, 4
        %s401 = smul.addr %s400, 4
        %s402 = scalar_lea.vmem %s2, %s401
        %p403 = pneg %p109
        %p404 = pneg %p106
        %p405 = scmp.lt.s32.totalorder %s29, 1
        %s406 = scalar_select %p405, %s29, 1
        %s407 = smul.addr %s406, 4
        %s408 = smul.addr %s407, 4
        %s409 = scalar_lea.vmem %s3, %s408
        %p410 = pneg %p135
        %p411 = pneg %p132
        %p412 = scmp.lt.s32.totalorder %s29, 1
        %s413 = scalar_select %p412, %s29, 1
        %s414 = smul.addr %s413, 4
        %s415 = smul.addr %s414, 4
        %s416 = scalar_lea.vmem %s4, %s415
        %p417 = pneg %p161
        %p418 = pneg %p158
        %p419 = scmp.lt.s32.totalorder %s29, 1
        %s420 = scalar_select %p419, %s29, 1
        %s421 = smul.addr %s420, 4
        %s422 = smul.addr %s421, 4
        %s423 = scalar_lea.vmem %s5, %s422
        %p424 = pneg %p187
        %p425 = pneg %p184
        %p426 = scmp.lt.s32.totalorder %s29, 1
        %s427 = scalar_select %p426, %s29, 1
        %s428 = smul.addr %s427, 16
        %s429 = smul.addr %s428, 4
        %s430 = scalar_lea.vmem %s6, %s429
        %p431 = pneg %p213
        %p432 = pneg %p210
        %s433 = sand.u32 %s226, 1
        %s434 = scalar_lea.sflag [#allocation7], %s433
        %s435 = sand.u32 %s226, 1
        %s436 = smul.addr %s435, 16
        %s437 = scalar_lea.vmem [#allocation6], %s436
        %p438 = pneg %p239
        %p439 = pneg %p236
        %p440 = pneg %p265
        %p441 = pneg %p262
        %s442 = smul.u32 2, %s28
        %p443 = scmp.lt.s32.totalorder %s29, 1
        %s444 = scalar_select %p443, %s29, 1
        %s445 = smul.addr %s444, 4
        %s446 = smul.addr %s445, 4
        %s447 = scalar_lea.vmem %s1, %s446
        %p448 = scmp.lt.s32.totalorder %s29, 1
        %s449 = scalar_select %p448, %s29, 1
        %s450 = smul.addr %s449, 4
        %s451 = smul.addr %s450, 4
        %s452 = scalar_lea.vmem %s2, %s451
        %p453 = scmp.lt.s32.totalorder %s29, 1
        %s454 = scalar_select %p453, %s29, 1
        %s455 = smul.addr %s454, 4
        %s456 = smul.addr %s455, 4
        %s457 = scalar_lea.vmem %s3, %s456
        %p458 = scmp.lt.s32.totalorder %s29, 1
        %s459 = scalar_select %p458, %s29, 1
        %s460 = smul.addr %s459, 4
        %s461 = smul.addr %s460, 4
        %s462 = scalar_lea.vmem %s4, %s461
        %p463 = scmp.lt.s32.totalorder %s29, 1
        %s464 = scalar_select %p463, %s29, 1
        %s465 = smul.addr %s464, 4
        %s466 = smul.addr %s465, 4
        %s467 = scalar_lea.vmem %s5, %s466
        %p468 = scmp.lt.s32.totalorder %s29, 1
        %s469 = scalar_select %p468, %s29, 1
        %s470 = smul.addr %s469, 16
        %s471 = smul.addr %s470, 4
        %s472 = scalar_lea.vmem %s6, %s471
        %s473 = smul.u32 2, %s28
        %p475 = scmp.eq.s32.totalorder %s29, 0
        // Predicated region
        $region61: #{tpu_custom_call.1} parent=51 // pred_check
          %p476 = pneg %p475
        $region62: #{tpu_custom_call.1} parent=51 // pred_check_branch
          %478 = sbr.rel (%p476) target = $region64
        $region63: #{tpu_custom_call.1} parent=51 // pred_region
          %v479 = vld [vmem:[#allocation3] sm:$0xff]
          %v480 = vld [vmem:[#allocation3 + $0x8] sm:$0xff]
          %vm481 = vcmask 261120
          %482 = vst.msk [vmem:[#allocation2] sm:$0xff] %vm481, %v479
          %483 = vst.msk [vmem:[#allocation2 + $0x8] sm:$0xff] %vm481, %v480
        $region64: #{tpu_custom_call.1} parent=51 // pred_fallthru
          _
        %v484 = vld [vmem:[#allocation2] sm:$0xff]
        %v485 = vld [vmem:[#allocation2 + $0x8] sm:$0xff]
        %v486 = vld [vmem:[%s384] sm:$0xff]
        %v487 = vld [vmem:[%s384 + $0x8] sm:$0xff]
        %v488 = vpack.c.bf16 %v485, %v484
        %v489 = vld [vmem:[%s447] sm:$0xf]
        %v490 = vld [vmem:[%s447 + $0x4] sm:$0xf]
        %v491 = vld [vmem:[%s447 + $0x8] sm:$0xf]
        %v492 = vld [vmem:[%s447 + $0xc] sm:$0xf]
        %v493 = vlaneseq
        %v494 = vshrl.u32 %v493, 7
        %v495 = vsub.s32 0, %v494
        %v496 = vrot.slane %v486, %v495
        %v501 = vunpack.c.l.b16 %v489
        %v502 = vunpack.c.l.b16 %v490
        %v503 = vunpack.c.l.b16 %v491
        %v504 = vunpack.c.l.b16 %v492
        %v505 = vpack.c.b16 %v502, %v501
        %v506 = vpack.c.b16 %v504, %v503
        %vm509 = vcmask 261120
        %v511 = vsel %vm509, %v488, 0
        %513 = vmatprep.subr.bf16.mxu0 0
        %514 = vmatpush1.bf16.msra.mxu0 %v505
        %515 = vmatprep.subr.bf16.mxu0 0
        %516 = vmatpush1.bf16.msra.mxu0 %v506
        %517 = vmatprep.subr.bf16.mxu0 0
        %518 = vmatpush1.bf16.msra.mxu0 0
        %519 = vmatprep.subr.bf16.mxu0 0
        %520 = vmatpush1.bf16.msra.mxu0 0
        %521 = vmatprep.subr.bf16.mxu0 0
        %522 = vmatpush1.bf16.msra.mxu0 0
        %523 = vmatprep.subr.bf16.mxu0 0
        %524 = vmatpush1.bf16.msra.mxu0 0
        %525 = vmatprep.subr.bf16.mxu0 0
        %526 = vmatpush1.bf16.msra.mxu0 0
        %527 = vmatprep.subr.bf16.mxu0 0
        %528 = vmatpush1.bf16.msra.mxu0 0
        %529 = vmatprep.subr.bf16.mxu0 0
        %530 = vmatpush1.bf16.msra.mxu0 0
        %531 = vmatprep.subr.bf16.mxu0 0
        %532 = vmatpush1.bf16.msra.mxu0 0
        %533 = vmatprep.subr.bf16.mxu0 0
        %534 = vmatpush1.bf16.msra.mxu0 0
        %535 = vmatprep.subr.bf16.mxu0 0
        %536 = vmatpush1.bf16.msra.mxu0 0
        %537 = vmatprep.subr.bf16.mxu0 0
        %538 = vmatpush1.bf16.msra.mxu0 0
        %539 = vmatprep.subr.bf16.mxu0 0
        %540 = vmatpush1.bf16.msra.mxu0 0
        %541 = vmatprep.subr.bf16.mxu0 0
        %542 = vmatpush1.bf16.msra.mxu0 0
        %543 = vmatprep.subr.bf16.mxu0 0
        %544 = vmatpush1.bf16.msra.mxu0 0
        %545 = vmatprep.mubr.bf16.mxu0 0
        %546 = vmatmul.mubr.bf16.gmra.mrb[0].mxu0 %v511
        %v547 = vpop.f32.mrb[0].mxu0
        %v548 = vadd.f32 %v496, %v547
        %v549 = vpop.f32.mrb[0].mxu0
        %v550 = vpop.f32.mrb[0].mxu0
        %v551 = vadd.f32 %v496, %v550
        %v552 = vpop.f32.mrb[0].mxu0
        %553 = vdwg.mxu0
        %v554 = vld [vmem:[%s452] sm:$0xf]
        %v555 = vld [vmem:[%s452 + $0x4] sm:$0xf]
        %v556 = vld [vmem:[%s452 + $0x8] sm:$0xf]
        %v557 = vld [vmem:[%s452 + $0xc] sm:$0xf]
        %v558 = vlaneseq
        %v559 = vshrl.u32 %v558, 7
        %v560 = vsub.s32 1, %v559
        %v561 = vrot.slane %v486, %v560
        %v566 = vunpack.c.l.b16 %v554
        %v567 = vunpack.c.l.b16 %v555
        %v568 = vunpack.c.l.b16 %v556
        %v569 = vunpack.c.l.b16 %v557
        %v570 = vpack.c.b16 %v567, %v566
        %v571 = vpack.c.b16 %v569, %v568
        %574 = vmatprep.subr.bf16.mxu0 0
        %575 = vmatpush1.bf16.msra.mxu0 %v570
        %576 = vmatprep.subr.bf16.mxu0 0
        %577 = vmatpush1.bf16.msra.mxu0 %v571
        %578 = vmatprep.subr.bf16.mxu0 0
        %579 = vmatpush1.bf16.msra.mxu0 0
        %580 = vmatprep.subr.bf16.mxu0 0
        %581 = vmatpush1.bf16.msra.mxu0 0
        %582 = vmatprep.subr.bf16.mxu0 0
        %583 = vmatpush1.bf16.msra.mxu0 0
        %584 = vmatprep.subr.bf16.mxu0 0
        %585 = vmatpush1.bf16.msra.mxu0 0
        %586 = vmatprep.subr.bf16.mxu0 0
        %587 = vmatpush1.bf16.msra.mxu0 0
        %588 = vmatprep.subr.bf16.mxu0 0
        %589 = vmatpush1.bf16.msra.mxu0 0
        %590 = vmatprep.subr.bf16.mxu0 0
        %591 = vmatpush1.bf16.msra.mxu0 0
        %592 = vmatprep.subr.bf16.mxu0 0
        %593 = vmatpush1.bf16.msra.mxu0 0
        %594 = vmatprep.subr.bf16.mxu0 0
        %595 = vmatpush1.bf16.msra.mxu0 0
        %596 = vmatprep.subr.bf16.mxu0 0
        %597 = vmatpush1.bf16.msra.mxu0 0
        %598 = vmatprep.subr.bf16.mxu0 0
        %599 = vmatpush1.bf16.msra.mxu0 0
        %600 = vmatprep.subr.bf16.mxu0 0
        %601 = vmatpush1.bf16.msra.mxu0 0
        %602 = vmatprep.subr.bf16.mxu0 0
        %603 = vmatpush1.bf16.msra.mxu0 0
        %604 = vmatprep.subr.bf16.mxu0 0
        %605 = vmatpush1.bf16.msra.mxu0 0
        %606 = vmatprep.mubr.bf16.mxu0 0
        %607 = vmatmul.mubr.bf16.gmra.mrb[0].mxu0 %v511
        %v608 = vpop.f32.mrb[0].mxu0
        %v609 = vadd.f32 %v561, %v608
        %v610 = vpop.f32.mrb[0].mxu0
        %v611 = vpop.f32.mrb[0].mxu0
        %v612 = vadd.f32 %v561, %v611
        %v613 = vpop.f32.mrb[0].mxu0
        %614 = vdwg.mxu0
        %v615 = vld [vmem:[%s457] sm:$0xf]
        %v616 = vld [vmem:[%s457 + $0x4] sm:$0xf]
        %v617 = vld [vmem:[%s457 + $0x8] sm:$0xf]
        %v618 = vld [vmem:[%s457 + $0xc] sm:$0xf]
        %v619 = vlaneseq
        %v620 = vshrl.u32 %v619, 7
        %v621 = vsub.s32 2, %v620
        %v622 = vrot.slane %v486, %v621
        %v627 = vunpack.c.l.b16 %v615
        %v628 = vunpack.c.l.b16 %v616
        %v629 = vunpack.c.l.b16 %v617
        %v630 = vunpack.c.l.b16 %v618
        %v631 = vpack.c.b16 %v628, %v627
        %v632 = vpack.c.b16 %v630, %v629
        %635 = vmatprep.subr.bf16.mxu0 0
        %636 = vmatpush1.bf16.msra.mxu0 %v631
        %637 = vmatprep.subr.bf16.mxu0 0
        %638 = vmatpush1.bf16.msra.mxu0 %v632
        %639 = vmatprep.subr.bf16.mxu0 0
        %640 = vmatpush1.bf16.msra.mxu0 0
        %641 = vmatprep.subr.bf16.mxu0 0
        %642 = vmatpush1.bf16.msra.mxu0 0
        %643 = vmatprep.subr.bf16.mxu0 0
        %644 = vmatpush1.bf16.msra.mxu0 0
        %645 = vmatprep.subr.bf16.mxu0 0
        %646 = vmatpush1.bf16.msra.mxu0 0
        %647 = vmatprep.subr.bf16.mxu0 0
        %648 = vmatpush1.bf16.msra.mxu0 0
        %649 = vmatprep.subr.bf16.mxu0 0
        %650 = vmatpush1.bf16.msra.mxu0 0
        %651 = vmatprep.subr.bf16.mxu0 0
        %652 = vmatpush1.bf16.msra.mxu0 0
        %653 = vmatprep.subr.bf16.mxu0 0
        %654 = vmatpush1.bf16.msra.mxu0 0
        %655 = vmatprep.subr.bf16.mxu0 0
        %656 = vmatpush1.bf16.msra.mxu0 0
        %657 = vmatprep.subr.bf16.mxu0 0
        %658 = vmatpush1.bf16.msra.mxu0 0
        %659 = vmatprep.subr.bf16.mxu0 0
        %660 = vmatpush1.bf16.msra.mxu0 0
        %661 = vmatprep.subr.bf16.mxu0 0
        %662 = vmatpush1.bf16.msra.mxu0 0
        %663 = vmatprep.subr.bf16.mxu0 0
        %664 = vmatpush1.bf16.msra.mxu0 0
        %665 = vmatprep.subr.bf16.mxu0 0
        %666 = vmatpush1.bf16.msra.mxu0 0
        %667 = vmatprep.mubr.bf16.mxu0 0
        %668 = vmatmul.mubr.bf16.gmra.mrb[0].mxu0 %v511
        %v669 = vpop.f32.mrb[0].mxu0
        %v670 = vadd.f32 %v622, %v669
        %v671 = vpop.f32.mrb[0].mxu0
        %v672 = vpop.f32.mrb[0].mxu0
        %v673 = vadd.f32 %v622, %v672
        %v674 = vpop.f32.mrb[0].mxu0
        %675 = vdwg.mxu0
        %v676 = vmul.f32 %v548, 0.35355338
        %v677 = vmul.f32 %v551, 0.35355338
        %v678 = vpack.c.bf16 %v676, %v676
        %v679 = vpack.c.bf16 %v677, %v677
        %v680 = vpack.c.bf16 %v609, %v609
        %v681 = vpack.c.bf16 %v612, %v612
        %v682 = vpack.c.bf16 %v670, %v670
        %v683 = vpack.c.bf16 %v673, %v673
        %vm684 = vcmask 64512
        %v686 = vsel %vm684, %v678, 0
        %v689 = vsel %vm684, %v680, 0
        %691 = vmatprep.subr.bf16.mxu0 0
        %692 = vmatpush1.bf16.xpose.msra.mxu0 %v689
        %693 = vmatprep.subr.bf16.mxu0 0
        %694 = vmatpush1.bf16.xpose.msra.mxu0 0
        %695 = vmatprep.subr.bf16.mxu0 0
        %696 = vmatpush1.bf16.xpose.msra.mxu0 0
        %697 = vmatprep.subr.bf16.mxu0 0
        %698 = vmatpush1.bf16.xpose.msra.mxu0 0
        %699 = vmatprep.subr.bf16.mxu0 0
        %700 = vmatpush1.bf16.xpose.msra.mxu0 0
        %701 = vmatprep.subr.bf16.mxu0 0
        %702 = vmatpush1.bf16.xpose.msra.mxu0 0
        %703 = vmatprep.subr.bf16.mxu0 0
        %704 = vmatpush1.bf16.xpose.msra.mxu0 0
        %705 = vmatprep.subr.bf16.mxu0 0
        %706 = vmatpush1.bf16.xpose.msra.mxu0 0
        %707 = vmatprep.subr.bf16.mxu0 0
        %708 = vmatpush1.bf16.xpose.msra.mxu0 0
        %709 = vmatprep.subr.bf16.mxu0 0
        %710 = vmatpush1.bf16.xpose.msra.mxu0 0
        %711 = vmatprep.subr.bf16.mxu0 0
        %712 = vmatpush1.bf16.xpose.msra.mxu0 0
        %713 = vmatprep.subr.bf16.mxu0 0
        %714 = vmatpush1.bf16.xpose.msra.mxu0 0
        %715 = vmatprep.subr.bf16.mxu0 0
        %716 = vmatpush1.bf16.xpose.msra.mxu0 0
        %717 = vmatprep.subr.bf16.mxu0 0
        %718 = vmatpush1.bf16.xpose.msra.mxu0 0
        %719 = vmatprep.subr.bf16.mxu0 0
        %720 = vmatpush1.bf16.xpose.msra.mxu0 0
        %721 = vmatprep.subr.bf16.mxu0 0
        %722 = vmatpush1.bf16.xpose.msra.mxu0 0
        %723 = vmatprep.mubr.bf16.mxu0 0
        %724 = vmatmul.mubr.bf16.gmra.mrb[0].mxu0 %v686
        %v725 = vpop.f32.mrb[0].mxu0
        %v726 = vadd.f32 0.0, %v725
        %v727 = vpop.f32.mrb[0].mxu0
        %v728 = vpop.f32.mrb[0].mxu0
        %v729 = vpop.f32.mrb[0].mxu0
        %730 = vdwg.mxu0
        %v732 = vsel %vm684, %v679, 0
        %v735 = vsel %vm684, %v681, 0
        %737 = vmatprep.subr.bf16.mxu0 0
        %738 = vmatpush1.bf16.xpose.msra.mxu0 %v735
        %739 = vmatprep.subr.bf16.mxu0 0
        %740 = vmatpush1.bf16.xpose.msra.mxu0 0
        %741 = vmatprep.subr.bf16.mxu0 0
        %742 = vmatpush1.bf16.xpose.msra.mxu0 0
        %743 = vmatprep.subr.bf16.mxu0 0
        %744 = vmatpush1.bf16.xpose.msra.mxu0 0
        %745 = vmatprep.subr.bf16.mxu0 0
        %746 = vmatpush1.bf16.xpose.msra.mxu0 0
        %747 = vmatprep.subr.bf16.mxu0 0
        %748 = vmatpush1.bf16.xpose.msra.mxu0 0
        %749 = vmatprep.subr.bf16.mxu0 0
        %750 = vmatpush1.bf16.xpose.msra.mxu0 0
        %751 = vmatprep.subr.bf16.mxu0 0
        %752 = vmatpush1.bf16.xpose.msra.mxu0 0
        %753 = vmatprep.subr.bf16.mxu0 0
        %754 = vmatpush1.bf16.xpose.msra.mxu0 0
        %755 = vmatprep.subr.bf16.mxu0 0
        %756 = vmatpush1.bf16.xpose.msra.mxu0 0
        %757 = vmatprep.subr.bf16.mxu0 0
        %758 = vmatpush1.bf16.xpose.msra.mxu0 0
        %759 = vmatprep.subr.bf16.mxu0 0
        %760 = vmatpush1.bf16.xpose.msra.mxu0 0
        %761 = vmatprep.subr.bf16.mxu0 0
        %762 = vmatpush1.bf16.xpose.msra.mxu0 0
        %763 = vmatprep.subr.bf16.mxu0 0
        %764 = vmatpush1.bf16.xpose.msra.mxu0 0
        %765 = vmatprep.subr.bf16.mxu0 0
        %766 = vmatpush1.bf16.xpose.msra.mxu0 0
        %767 = vmatprep.subr.bf16.mxu0 0
        %768 = vmatpush1.bf16.xpose.msra.mxu0 0
        %769 = vmatprep.mubr.bf16.mxu0 0
        %770 = vmatmul.mubr.bf16.gmra.mrb[0].mxu0 %v732
        %v771 = vpop.f32.mrb[0].mxu0
        %v772 = vadd.f32 0.0, %v771
        %v773 = vpop.f32.mrb[0].mxu0
        %v774 = vpop.f32.mrb[0].mxu0
        %v775 = vpop.f32.mrb[0].mxu0
        %776 = vdwg.mxu0
        %v777 = vsel %vm684, %v726, -inf
        %778 = vmax.xlane.f32.xlu0 %v777
        %v779 = vpop.xlane.xlu0 %778
        %v780 = vsel %vm684, %v772, -inf
        %781 = vmax.xlane.f32.xlu0 %v780
        %v782 = vpop.xlane.xlu0 %781
        %v783 = vsub.f32 %v726, %v779
        %v784 = vsub.f32 %v772, %v782
        %v785 = vmul.f32 %v783, 1.442695
        %v786 = vpow.pop %v785
        %v787 = vmul.f32 %v784, 1.442695
        %v788 = vpow.pop %v787
        %v789 = vsel %vm684, %v786, 0.0
        %790 = vadd.xlane.f32.xlu0 %v789
        %v791 = vpop.xlane.xlu0 %790
        %v792 = vsel %vm684, %v788, 0.0
        %793 = vadd.xlane.f32.xlu0 %v792
        %v794 = vpop.xlane.xlu0 %793
        %v795 = vrcp.pop %v791
        %v796 = vrcp.pop %v794
        %v797 = vmul.f32 %v786, %v795
        %v798 = vmul.f32 %v788, %v796
        %v799 = vpack.c.bf16 %v797, %v797
        %v800 = vpack.c.bf16 %v798, %v798
        %v802 = vsel %vm684, %v799, 0
        %vm804 = vcmask 1043456
        %v806 = vsel %vm804, %v682, 0
        %808 = vmatprep.subr.bf16.mxu0 0
        %809 = vmatpush1.bf16.msra.mxu0 %v806
        %810 = vmatprep.subr.bf16.mxu0 0
        %811 = vmatpush1.bf16.msra.mxu0 0
        %812 = vmatprep.subr.bf16.mxu0 0
        %813 = vmatpush1.bf16.msra.mxu0 0
        %814 = vmatprep.subr.bf16.mxu0 0
        %815 = vmatpush1.bf16.msra.mxu0 0
        %816 = vmatprep.subr.bf16.mxu0 0
        %817 = vmatpush1.bf16.msra.mxu0 0
        %818 = vmatprep.subr.bf16.mxu0 0
        %819 = vmatpush1.bf16.msra.mxu0 0
        %820 = vmatprep.subr.bf16.mxu0 0
        %821 = vmatpush1.bf16.msra.mxu0 0
        %822 = vmatprep.subr.bf16.mxu0 0
        %823 = vmatpush1.bf16.msra.mxu0 0
        %824 = vmatprep.subr.bf16.mxu0 0
        %825 = vmatpush1.bf16.msra.mxu0 0
        %826 = vmatprep.subr.bf16.mxu0 0
        %827 = vmatpush1.bf16.msra.mxu0 0
        %828 = vmatprep.subr.bf16.mxu0 0
        %829 = vmatpush1.bf16.msra.mxu0 0
        %830 = vmatprep.subr.bf16.mxu0 0
        %831 = vmatpush1.bf16.msra.mxu0 0
        %832 = vmatprep.subr.bf16.mxu0 0
        %833 = vmatpush1.bf16.msra.mxu0 0
        %834 = vmatprep.subr.bf16.mxu0 0
        %835 = vmatpush1.bf16.msra.mxu0 0
        %836 = vmatprep.subr.bf16.mxu0 0
        %837 = vmatpush1.bf16.msra.mxu0 0
        %838 = vmatprep.subr.bf16.mxu0 0
        %839 = vmatpush1.bf16.msra.mxu0 0
        %840 = vmatprep.mubr.bf16.mxu0 0
        %841 = vmatmul.mubr.bf16.gmra.mrb[0].mxu0 %v802
        %v842 = vpop.f32.mrb[0].mxu0
        %v843 = vadd.f32 0.0, %v842
        %v844 = vpop.f32.mrb[0].mxu0
        %v845 = vpop.f32.mrb[0].mxu0
        %v846 = vpop.f32.mrb[0].mxu0
        %847 = vdwg.mxu0
        %v849 = vsel %vm684, %v800, 0
        %v852 = vsel %vm804, %v683, 0
        %854 = vmatprep.subr.bf16.mxu0 0
        %855 = vmatpush1.bf16.msra.mxu0 %v852
        %856 = vmatprep.subr.bf16.mxu0 0
        %857 = vmatpush1.bf16.msra.mxu0 0
        %858 = vmatprep.subr.bf16.mxu0 0
        %859 = vmatpush1.bf16.msra.mxu0 0
        %860 = vmatprep.subr.bf16.mxu0 0
        %861 = vmatpush1.bf16.msra.mxu0 0
        %862 = vmatprep.subr.bf16.mxu0 0
        %863 = vmatpush1.bf16.msra.mxu0 0
        %864 = vmatprep.subr.bf16.mxu0 0
        %865 = vmatpush1.bf16.msra.mxu0 0
        %866 = vmatprep.subr.bf16.mxu0 0
        %867 = vmatpush1.bf16.msra.mxu0 0
        %868 = vmatprep.subr.bf16.mxu0 0
        %869 = vmatpush1.bf16.msra.mxu0 0
        %870 = vmatprep.subr.bf16.mxu0 0
        %871 = vmatpush1.bf16.msra.mxu0 0
        %872 = vmatprep.subr.bf16.mxu0 0
        %873 = vmatpush1.bf16.msra.mxu0 0
        %874 = vmatprep.subr.bf16.mxu0 0
        %875 = vmatpush1.bf16.msra.mxu0 0
        %876 = vmatprep.subr.bf16.mxu0 0
        %877 = vmatpush1.bf16.msra.mxu0 0
        %878 = vmatprep.subr.bf16.mxu0 0
        %879 = vmatpush1.bf16.msra.mxu0 0
        %880 = vmatprep.subr.bf16.mxu0 0
        %881 = vmatpush1.bf16.msra.mxu0 0
        %882 = vmatprep.subr.bf16.mxu0 0
        %883 = vmatpush1.bf16.msra.mxu0 0
        %884 = vmatprep.subr.bf16.mxu0 0
        %885 = vmatpush1.bf16.msra.mxu0 0
        %886 = vmatprep.mubr.bf16.mxu0 0
        %887 = vmatmul.mubr.bf16.gmra.mrb[0].mxu0 %v849
        %v888 = vpop.f32.mrb[0].mxu0
        %v889 = vadd.f32 0.0, %v888
        %v890 = vpop.f32.mrb[0].mxu0
        %v891 = vpop.f32.mrb[0].mxu0
        %v892 = vpop.f32.mrb[0].mxu0
        %893 = vdwg.mxu0
        %v894 = vpack.c.bf16 %v889, %v843
        %v895 = vld [vmem:[%s462] sm:$0xf]
        %897 = vrot.lane.b32.xlu0 %v678, 120
        %v898 = vpop.permute.xlu0 %897
        %900 = vrot.lane.b32.xlu0 %v680, 120
        %v901 = vpop.permute.xlu0 %900
        %v903 = vsel %vm684, %v898, 0
        %v906 = vsel %vm684, %v901, 0
        %908 = vmatprep.subr.bf16.mxu0 0
        %909 = vmatpush1.bf16.xpose.msra.mxu0 %v906
        %910 = vmatprep.subr.bf16.mxu0 0
        %911 = vmatpush1.bf16.xpose.msra.mxu0 0
        %912 = vmatprep.subr.bf16.mxu0 0
        %913 = vmatpush1.bf16.xpose.msra.mxu0 0
        %914 = vmatprep.subr.bf16.mxu0 0
        %915 = vmatpush1.bf16.xpose.msra.mxu0 0
        %916 = vmatprep.subr.bf16.mxu0 0
        %917 = vmatpush1.bf16.xpose.msra.mxu0 0
        %918 = vmatprep.subr.bf16.mxu0 0
        %919 = vmatpush1.bf16.xpose.msra.mxu0 0
        %920 = vmatprep.subr.bf16.mxu0 0
        %921 = vmatpush1.bf16.xpose.msra.mxu0 0
        %922 = vmatprep.subr.bf16.mxu0 0
        %923 = vmatpush1.bf16.xpose.msra.mxu0 0
        %924 = vmatprep.subr.bf16.mxu0 0
        %925 = vmatpush1.bf16.xpose.msra.mxu0 0
        %926 = vmatprep.subr.bf16.mxu0 0
        %927 = vmatpush1.bf16.xpose.msra.mxu0 0
        %928 = vmatprep.subr.bf16.mxu0 0
        %929 = vmatpush1.bf16.xpose.msra.mxu0 0
        %930 = vmatprep.subr.bf16.mxu0 0
        %931 = vmatpush1.bf16.xpose.msra.mxu0 0
        %932 = vmatprep.subr.bf16.mxu0 0
        %933 = vmatpush1.bf16.xpose.msra.mxu0 0
        %934 = vmatprep.subr.bf16.mxu0 0
        %935 = vmatpush1.bf16.xpose.msra.mxu0 0
        %936 = vmatprep.subr.bf16.mxu0 0
        %937 = vmatpush1.bf16.xpose.msra.mxu0 0
        %938 = vmatprep.subr.bf16.mxu0 0
        %939 = vmatpush1.bf16.xpose.msra.mxu0 0
        %940 = vmatprep.mubr.bf16.mxu0 0
        %941 = vmatmul.mubr.bf16.gmra.mrb[0].mxu0 %v903
        %v942 = vpop.f32.mrb[0].mxu0
        %v943 = vadd.f32 0.0, %v942
        %v944 = vpop.f32.mrb[0].mxu0
        %v945 = vpop.f32.mrb[0].mxu0
        %v946 = vpop.f32.mrb[0].mxu0
        %947 = vdwg.mxu0
        %949 = vrot.lane.b32.xlu0 %v679, 120
        %v950 = vpop.permute.xlu0 %949
        %952 = vrot.lane.b32.xlu0 %v681, 120
        %v953 = vpop.permute.xlu0 %952
        %v955 = vsel %vm684, %v950, 0
        %v958 = vsel %vm684, %v953, 0
        %960 = vmatprep.subr.bf16.mxu0 0
        %961 = vmatpush1.bf16.xpose.msra.mxu0 %v958
        %962 = vmatprep.subr.bf16.mxu0 0
        %963 = vmatpush1.bf16.xpose.msra.mxu0 0
        %964 = vmatprep.subr.bf16.mxu0 0
        %965 = vmatpush1.bf16.xpose.msra.mxu0 0
        %966 = vmatprep.subr.bf16.mxu0 0
        %967 = vmatpush1.bf16.xpose.msra.mxu0 0
        %968 = vmatprep.subr.bf16.mxu0 0
        %969 = vmatpush1.bf16.xpose.msra.mxu0 0
        %970 = vmatprep.subr.bf16.mxu0 0
        %971 = vmatpush1.bf16.xpose.msra.mxu0 0
        %972 = vmatprep.subr.bf16.mxu0 0
        %973 = vmatpush1.bf16.xpose.msra.mxu0 0
        %974 = vmatprep.subr.bf16.mxu0 0
        %975 = vmatpush1.bf16.xpose.msra.mxu0 0
        %976 = vmatprep.subr.bf16.mxu0 0
        %977 = vmatpush1.bf16.xpose.msra.mxu0 0
        %978 = vmatprep.subr.bf16.mxu0 0
        %979 = vmatpush1.bf16.xpose.msra.mxu0 0
        %980 = vmatprep.subr.bf16.mxu0 0
        %981 = vmatpush1.bf16.xpose.msra.mxu0 0
        %982 = vmatprep.subr.bf16.mxu0 0
        %983 = vmatpush1.bf16.xpose.msra.mxu0 0
        %984 = vmatprep.subr.bf16.mxu0 0
        %985 = vmatpush1.bf16.xpose.msra.mxu0 0
        %986 = vmatprep.subr.bf16.mxu0 0
        %987 = vmatpush1.bf16.xpose.msra.mxu0 0
        %988 = vmatprep.subr.bf16.mxu0 0
        %989 = vmatpush1.bf16.xpose.msra.mxu0 0
        %990 = vmatprep.subr.bf16.mxu0 0
        %991 = vmatpush1.bf16.xpose.msra.mxu0 0
        %992 = vmatprep.mubr.bf16.mxu0 0
        %993 = vmatmul.mubr.bf16.gmra.mrb[0].mxu0 %v955
        %v994 = vpop.f32.mrb[0].mxu0
        %v995 = vadd.f32 0.0, %v994
        %v996 = vpop.f32.mrb[0].mxu0
        %v997 = vpop.f32.mrb[0].mxu0
        %v998 = vpop.f32.mrb[0].mxu0
        %999 = vdwg.mxu0
        %v1000 = vsel %vm684, %v943, -inf
        %1001 = vmax.xlane.f32.xlu0 %v1000
        %v1002 = vpop.xlane.xlu0 %1001
        %v1003 = vsel %vm684, %v995, -inf
        %1004 = vmax.xlane.f32.xlu0 %v1003
        %v1005 = vpop.xlane.xlu0 %1004
        %v1006 = vsub.f32 %v943, %v1002
        %v1007 = vsub.f32 %v995, %v1005
        %v1008 = vmul.f32 %v1006, 1.442695
        %v1009 = vpow.pop %v1008
        %v1010 = vmul.f32 %v1007, 1.442695
        %v1011 = vpow.pop %v1010
        %v1012 = vsel %vm684, %v1009, 0.0
        %1013 = vadd.xlane.f32.xlu0 %v1012
        %v1014 = vpop.xlane.xlu0 %1013
        %v1015 = vsel %vm684, %v1011, 0.0
        %1016 = vadd.xlane.f32.xlu0 %v1015
        %v1017 = vpop.xlane.xlu0 %1016
        %v1018 = vrcp.pop %v1014
        %v1019 = vrcp.pop %v1017
        %v1020 = vmul.f32 %v1009, %v1018
        %v1021 = vmul.f32 %v1011, %v1019
        %v1022 = vpack.c.bf16 %v1020, %v1020
        %v1023 = vpack.c.bf16 %v1021, %v1021
        %1025 = vrot.lane.b32.xlu0 %v682, 120
        %v1026 = vpop.permute.xlu0 %1025
        %v1028 = vsel %vm684, %v1022, 0
        %v1031 = vsel %vm804, %v1026, 0
        %1033 = vmatprep.subr.bf16.mxu0 0
        %1034 = vmatpush1.bf16.msra.mxu0 %v1031
        %1035 = vmatprep.subr.bf16.mxu0 0
        %1036 = vmatpush1.bf16.msra.mxu0 0
        %1037 = vmatprep.subr.bf16.mxu0 0
        %1038 = vmatpush1.bf16.msra.mxu0 0
        %1039 = vmatprep.subr.bf16.mxu0 0
        %1040 = vmatpush1.bf16.msra.mxu0 0
        %1041 = vmatprep.subr.bf16.mxu0 0
        %1042 = vmatpush1.bf16.msra.mxu0 0
        %1043 = vmatprep.subr.bf16.mxu0 0
        %1044 = vmatpush1.bf16.msra.mxu0 0
        %1045 = vmatprep.subr.bf16.mxu0 0
        %1046 = vmatpush1.bf16.msra.mxu0 0
        %1047 = vmatprep.subr.bf16.mxu0 0
        %1048 = vmatpush1.bf16.msra.mxu0 0
        %1049 = vmatprep.subr.bf16.mxu0 0
        %1050 = vmatpush1.bf16.msra.mxu0 0
        %1051 = vmatprep.subr.bf16.mxu0 0
        %1052 = vmatpush1.bf16.msra.mxu0 0
        %1053 = vmatprep.subr.bf16.mxu0 0
        %1054 = vmatpush1.bf16.msra.mxu0 0
        %1055 = vmatprep.subr.bf16.mxu0 0
        %1056 = vmatpush1.bf16.msra.mxu0 0
        %1057 = vmatprep.subr.bf16.mxu0 0
        %1058 = vmatpush1.bf16.msra.mxu0 0
        %1059 = vmatprep.subr.bf16.mxu0 0
        %1060 = vmatpush1.bf16.msra.mxu0 0
        %1061 = vmatprep.subr.bf16.mxu0 0
        %1062 = vmatpush1.bf16.msra.mxu0 0
        %1063 = vmatprep.subr.bf16.mxu0 0
        %1064 = vmatpush1.bf16.msra.mxu0 0
        %1065 = vmatprep.mubr.bf16.mxu0 0
        %1066 = vmatmul.mubr.bf16.gmra.mrb[0].mxu0 %v1028
        %v1067 = vpop.f32.mrb[0].mxu0
        %v1068 = vadd.f32 0.0, %v1067
        %v1069 = vpop.f32.mrb[0].mxu0
        %v1070 = vpop.f32.mrb[0].mxu0
        %v1071 = vpop.f32.mrb[0].mxu0
        %1072 = vdwg.mxu0
        %1074 = vrot.lane.b32.xlu0 %v683, 120
        %v1075 = vpop.permute.xlu0 %1074
        %v1077 = vsel %vm684, %v1023, 0
        %v1080 = vsel %vm804, %v1075, 0
        %1082 = vmatprep.subr.bf16.mxu0 0
        %1083 = vmatpush1.bf16.msra.mxu0 %v1080
        %1084 = vmatprep.subr.bf16.mxu0 0
        %1085 = vmatpush1.bf16.msra.mxu0 0
        %1086 = vmatprep.subr.bf16.mxu0 0
        %1087 = vmatpush1.bf16.msra.mxu0 0
        %1088 = vmatprep.subr.bf16.mxu0 0
        %1089 = vmatpush1.bf16.msra.mxu0 0
        %1090 = vmatprep.subr.bf16.mxu0 0
        %1091 = vmatpush1.bf16.msra.mxu0 0
        %1092 = vmatprep.subr.bf16.mxu0 0
        %1093 = vmatpush1.bf16.msra.mxu0 0
        %1094 = vmatprep.subr.bf16.mxu0 0
        %1095 = vmatpush1.bf16.msra.mxu0 0
        %1096 = vmatprep.subr.bf16.mxu0 0
        %1097 = vmatpush1.bf16.msra.mxu0 0
        %1098 = vmatprep.subr.bf16.mxu0 0
        %1099 = vmatpush1.bf16.msra.mxu0 0
        %1100 = vmatprep.subr.bf16.mxu0 0
        %1101 = vmatpush1.bf16.msra.mxu0 0
        %1102 = vmatprep.subr.bf16.mxu0 0
        %1103 = vmatpush1.bf16.msra.mxu0 0
        %1104 = vmatprep.subr.bf16.mxu0 0
        %1105 = vmatpush1.bf16.msra.mxu0 0
        %1106 = vmatprep.subr.bf16.mxu0 0
        %1107 = vmatpush1.bf16.msra.mxu0 0
        %1108 = vmatprep.subr.bf16.mxu0 0
        %1109 = vmatpush1.bf16.msra.mxu0 0
        %1110 = vmatprep.subr.bf16.mxu0 0
        %1111 = vmatpush1.bf16.msra.mxu0 0
        %1112 = vmatprep.subr.bf16.mxu0 0
        %1113 = vmatpush1.bf16.msra.mxu0 0
        %1114 = vmatprep.mubr.bf16.mxu0 0
        %1115 = vmatmul.mubr.bf16.gmra.mrb[0].mxu0 %v1077
        %v1116 = vpop.f32.mrb[0].mxu0
        %v1117 = vadd.f32 0.0, %v1116
        %v1118 = vpop.f32.mrb[0].mxu0
        %v1119 = vpop.f32.mrb[0].mxu0
        %v1120 = vpop.f32.mrb[0].mxu0
        %1121 = vdwg.mxu0
        %v1122 = vpack.c.bf16 %v1117, %v1068
        %v1123 = vld [vmem:[%s462 + $0x4] sm:$0xf]
        %v1125 = vsel %vm684, %v1122, 0
        %v1128 = vsel %vm804, %v1123, 0
        %1130 = vmatprep.subr.bf16.mxu0 0
        %1131 = vmatpush1.bf16.msra.mxu0 %v1128
        %1132 = vmatprep.subr.bf16.mxu0 0
        %1133 = vmatpush1.bf16.msra.mxu0 0
        %1134 = vmatprep.subr.bf16.mxu0 0
        %1135 = vmatpush1.bf16.msra.mxu0 0
        %1136 = vmatprep.subr.bf16.mxu0 0
        %1137 = vmatpush1.bf16.msra.mxu0 0
        %1138 = vmatprep.subr.bf16.mxu0 0
        %1139 = vmatpush1.bf16.msra.mxu0 0
        %1140 = vmatprep.subr.bf16.mxu0 0
        %1141 = vmatpush1.bf16.msra.mxu0 0
        %1142 = vmatprep.subr.bf16.mxu0 0
        %1143 = vmatpush1.bf16.msra.mxu0 0
        %1144 = vmatprep.subr.bf16.mxu0 0
        %1145 = vmatpush1.bf16.msra.mxu0 0
        %1146 = vmatprep.subr.bf16.mxu0 0
        %1147 = vmatpush1.bf16.msra.mxu0 0
        %1148 = vmatprep.subr.bf16.mxu0 0
        %1149 = vmatpush1.bf16.msra.mxu0 0
        %1150 = vmatprep.subr.bf16.mxu0 0
        %1151 = vmatpush1.bf16.msra.mxu0 0
        %1152 = vmatprep.subr.bf16.mxu0 0
        %1153 = vmatpush1.bf16.msra.mxu0 0
        %1154 = vmatprep.subr.bf16.mxu0 0
        %1155 = vmatpush1.bf16.msra.mxu0 0
        %1156 = vmatprep.subr.bf16.mxu0 0
        %1157 = vmatpush1.bf16.msra.mxu0 0
        %1158 = vmatprep.subr.bf16.mxu0 0
        %1159 = vmatpush1.bf16.msra.mxu0 0
        %1160 = vmatprep.subr.bf16.mxu0 0
        %1161 = vmatpush1.bf16.msra.mxu0 0
        %1162 = vmatprep.mubr.bf16.mxu0 0
        %1163 = vmatmul.mubr.bf16.gmra.mrb[0].mxu0 %v1125
        %v1164 = vpop.f32.mrb[0].mxu0
        %v1165 = vadd.f32 0.0, %v1164
        %v1166 = vpop.f32.mrb[0].mxu0
        %v1167 = vpop.f32.mrb[0].mxu0
        %v1168 = vadd.f32 0.0, %v1167
        %v1169 = vpop.f32.mrb[0].mxu0
        %1170 = vdwg.mxu0
        %v1172 = vsel %vm684, %v894, 0
        %v1175 = vsel %vm804, %v895, 0
        %1177 = vmatprep.subr.bf16.mxu0 0
        %1178 = vmatpush1.bf16.msra.mxu0 %v1175
        %1179 = vmatprep.subr.bf16.mxu0 0
        %1180 = vmatpush1.bf16.msra.mxu0 0
        %1181 = vmatprep.subr.bf16.mxu0 0
        %1182 = vmatpush1.bf16.msra.mxu0 0
        %1183 = vmatprep.subr.bf16.mxu0 0
        %1184 = vmatpush1.bf16.msra.mxu0 0
        %1185 = vmatprep.subr.bf16.mxu0 0
        %1186 = vmatpush1.bf16.msra.mxu0 0
        %1187 = vmatprep.subr.bf16.mxu0 0
        %1188 = vmatpush1.bf16.msra.mxu0 0
        %1189 = vmatprep.subr.bf16.mxu0 0
        %1190 = vmatpush1.bf16.msra.mxu0 0
        %1191 = vmatprep.subr.bf16.mxu0 0
        %1192 = vmatpush1.bf16.msra.mxu0 0
        %1193 = vmatprep.subr.bf16.mxu0 0
        %1194 = vmatpush1.bf16.msra.mxu0 0
        %1195 = vmatprep.subr.bf16.mxu0 0
        %1196 = vmatpush1.bf16.msra.mxu0 0
        %1197 = vmatprep.subr.bf16.mxu0 0
        %1198 = vmatpush1.bf16.msra.mxu0 0
        %1199 = vmatprep.subr.bf16.mxu0 0
        %1200 = vmatpush1.bf16.msra.mxu0 0
        %1201 = vmatprep.subr.bf16.mxu0 0
        %1202 = vmatpush1.bf16.msra.mxu0 0
        %1203 = vmatprep.subr.bf16.mxu0 0
        %1204 = vmatpush1.bf16.msra.mxu0 0
        %1205 = vmatprep.subr.bf16.mxu0 0
        %1206 = vmatpush1.bf16.msra.mxu0 0
        %1207 = vmatprep.subr.bf16.mxu0 0
        %1208 = vmatpush1.bf16.msra.mxu0 0
        %1209 = vmatprep.mubr.bf16.mxu0 0
        %1210 = vmatmul.mubr.bf16.gmra.mrb[0].mxu0 %v1172
        %v1211 = vpop.f32.mrb[0].mxu0
        %v1212 = vadd.f32 %v1165, %v1211
        %v1213 = vpop.f32.mrb[0].mxu0
        %v1214 = vpop.f32.mrb[0].mxu0
        %v1215 = vadd.f32 %v1168, %v1214
        %v1216 = vpop.f32.mrb[0].mxu0
        %1217 = vdwg.mxu0
        %1218 = vrot.lane.b32.xlu0 %v678, 112
        %v1219 = vpop.permute.xlu0 %1218
        %1220 = vrot.lane.b32.xlu0 %v680, 112
        %v1221 = vpop.permute.xlu0 %1220
        %v1223 = vsel %vm684, %v1219, 0
        %v1226 = vsel %vm684, %v1221, 0
        %1228 = vmatprep.subr.bf16.mxu0 0
        %1229 = vmatpush1.bf16.xpose.msra.mxu0 %v1226
        %1230 = vmatprep.subr.bf16.mxu0 0
        %1231 = vmatpush1.bf16.xpose.msra.mxu0 0
        %1232 = vmatprep.subr.bf16.mxu0 0
        %1233 = vmatpush1.bf16.xpose.msra.mxu0 0
        %1234 = vmatprep.subr.bf16.mxu0 0
        %1235 = vmatpush1.bf16.xpose.msra.mxu0 0
        %1236 = vmatprep.subr.bf16.mxu0 0
        %1237 = vmatpush1.bf16.xpose.msra.mxu0 0
        %1238 = vmatprep.subr.bf16.mxu0 0
        %1239 = vmatpush1.bf16.xpose.msra.mxu0 0
        %1240 = vmatprep.subr.bf16.mxu0 0
        %1241 = vmatpush1.bf16.xpose.msra.mxu0 0
        %1242 = vmatprep.subr.bf16.mxu0 0
        %1243 = vmatpush1.bf16.xpose.msra.mxu0 0
        %1244 = vmatprep.subr.bf16.mxu0 0
        %1245 = vmatpush1.bf16.xpose.msra.mxu0 0
        %1246 = vmatprep.subr.bf16.mxu0 0
        %1247 = vmatpush1.bf16.xpose.msra.mxu0 0
        %1248 = vmatprep.subr.bf16.mxu0 0
        %1249 = vmatpush1.bf16.xpose.msra.mxu0 0
        %1250 = vmatprep.subr.bf16.mxu0 0
        %1251 = vmatpush1.bf16.xpose.msra.mxu0 0
        %1252 = vmatprep.subr.bf16.mxu0 0
        %1253 = vmatpush1.bf16.xpose.msra.mxu0 0
        %1254 = vmatprep.subr.bf16.mxu0 0
        %1255 = vmatpush1.bf16.xpose.msra.mxu0 0
        %1256 = vmatprep.subr.bf16.mxu0 0
        %1257 = vmatpush1.bf16.xpose.msra.mxu0 0
        %1258 = vmatprep.subr.bf16.mxu0 0
        %1259 = vmatpush1.bf16.xpose.msra.mxu0 0
        %1260 = vmatprep.mubr.bf16.mxu0 0
        %1261 = vmatmul.mubr.bf16.gmra.mrb[0].mxu0 %v1223
        %v1262 = vpop.f32.mrb[0].mxu0
        %v1263 = vadd.f32 0.0, %v1262
        %v1264 = vpop.f32.mrb[0].mxu0
        %v1265 = vpop.f32.mrb[0].mxu0
        %v1266 = vpop.f32.mrb[0].mxu0
        %1267 = vdwg.mxu0
        %1268 = vrot.lane.b32.xlu0 %v679, 112
        %v1269 = vpop.permute.xlu0 %1268
        %1270 = vrot.lane.b32.xlu0 %v681, 112
        %v1271 = vpop.permute.xlu0 %1270
        %v1273 = vsel %vm684, %v1269, 0
        %v1276 = vsel %vm684, %v1271, 0
        %1278 = vmatprep.subr.bf16.mxu0 0
        %1279 = vmatpush1.bf16.xpose.msra.mxu0 %v1276
        %1280 = vmatprep.subr.bf16.mxu0 0
        %1281 = vmatpush1.bf16.xpose.msra.mxu0 0
        %1282 = vmatprep.subr.bf16.mxu0 0
        %1283 = vmatpush1.bf16.xpose.msra.mxu0 0
        %1284 = vmatprep.subr.bf16.mxu0 0
        %1285 = vmatpush1.bf16.xpose.msra.mxu0 0
        %1286 = vmatprep.subr.bf16.mxu0 0
        %1287 = vmatpush1.bf16.xpose.msra.mxu0 0
        %1288 = vmatprep.subr.bf16.mxu0 0
        %1289 = vmatpush1.bf16.xpose.msra.mxu0 0
        %1290 = vmatprep.subr.bf16.mxu0 0
        %1291 = vmatpush1.bf16.xpose.msra.mxu0 0
        %1292 = vmatprep.subr.bf16.mxu0 0
        %1293 = vmatpush1.bf16.xpose.msra.mxu0 0
        %1294 = vmatprep.subr.bf16.mxu0 0
        %1295 = vmatpush1.bf16.xpose.msra.mxu0 0
        %1296 = vmatprep.subr.bf16.mxu0 0
        %1297 = vmatpush1.bf16.xpose.msra.mxu0 0
        %1298 = vmatprep.subr.bf16.mxu0 0
        %1299 = vmatpush1.bf16.xpose.msra.mxu0 0
        %1300 = vmatprep.subr.bf16.mxu0 0
        %1301 = vmatpush1.bf16.xpose.msra.mxu0 0
        %1302 = vmatprep.subr.bf16.mxu0 0
        %1303 = vmatpush1.bf16.xpose.msra.mxu0 0
        %1304 = vmatprep.subr.bf16.mxu0 0
        %1305 = vmatpush1.bf16.xpose.msra.mxu0 0
        %1306 = vmatprep.subr.bf16.mxu0 0
        %1307 = vmatpush1.bf16.xpose.msra.mxu0 0
        %1308 = vmatprep.subr.bf16.mxu0 0
        %1309 = vmatpush1.bf16.xpose.msra.mxu0 0
        %1310 = vmatprep.mubr.bf16.mxu0 0
        %1311 = vmatmul.mubr.bf16.gmra.mrb[0].mxu0 %v1273
        %v1312 = vpop.f32.mrb[0].mxu0
        %v1313 = vadd.f32 0.0, %v1312
        %v1314 = vpop.f32.mrb[0].mxu0
        %v1315 = vpop.f32.mrb[0].mxu0
        %v1316 = vpop.f32.mrb[0].mxu0
        %1317 = vdwg.mxu0
        %v1318 = vsel %vm684, %v1263, -inf
        %1319 = vmax.xlane.f32.xlu0 %v1318
        %v1320 = vpop.xlane.xlu0 %1319
        %v1321 = vsel %vm684, %v1313, -inf
        %1322 = vmax.xlane.f32.xlu0 %v1321
        %v1323 = vpop.xlane.xlu0 %1322
        %v1324 = vsub.f32 %v1263, %v1320
        %v1325 = vsub.f32 %v1313, %v1323
        %v1326 = vmul.f32 %v1324, 1.442695
        %v1327 = vpow.pop %v1326
        %v1328 = vmul.f32 %v1325, 1.442695
        %v1329 = vpow.pop %v1328
        %v1330 = vsel %vm684, %v1327, 0.0
        %1331 = vadd.xlane.f32.xlu0 %v1330
        %v1332 = vpop.xlane.xlu0 %1331
        %v1333 = vsel %vm684, %v1329, 0.0
        %1334 = vadd.xlane.f32.xlu0 %v1333
        %v1335 = vpop.xlane.xlu0 %1334
        %v1336 = vrcp.pop %v1332
        %v1337 = vrcp.pop %v1335
        %v1338 = vmul.f32 %v1327, %v1336
        %v1339 = vmul.f32 %v1329, %v1337
        %v1340 = vpack.c.bf16 %v1338, %v1338
        %v1341 = vpack.c.bf16 %v1339, %v1339
        %1342 = vrot.lane.b32.xlu0 %v682, 112
        %v1343 = vpop.permute.xlu0 %1342
        %v1345 = vsel %vm684, %v1340, 0
        %v1348 = vsel %vm804, %v1343, 0
        %1350 = vmatprep.subr.bf16.mxu0 0
        %1351 = vmatpush1.bf16.msra.mxu0 %v1348
        %1352 = vmatprep.subr.bf16.mxu0 0
        %1353 = vmatpush1.bf16.msra.mxu0 0
        %1354 = vmatprep.subr.bf16.mxu0 0
        %1355 = vmatpush1.bf16.msra.mxu0 0
        %1356 = vmatprep.subr.bf16.mxu0 0
        %1357 = vmatpush1.bf16.msra.mxu0 0
        %1358 = vmatprep.subr.bf16.mxu0 0
        %1359 = vmatpush1.bf16.msra.mxu0 0
        %1360 = vmatprep.subr.bf16.mxu0 0
        %1361 = vmatpush1.bf16.msra.mxu0 0
        %1362 = vmatprep.subr.bf16.mxu0 0
        %1363 = vmatpush1.bf16.msra.mxu0 0
        %1364 = vmatprep.subr.bf16.mxu0 0
        %1365 = vmatpush1.bf16.msra.mxu0 0
        %1366 = vmatprep.subr.bf16.mxu0 0
        %1367 = vmatpush1.bf16.msra.mxu0 0
        %1368 = vmatprep.subr.bf16.mxu0 0
        %1369 = vmatpush1.bf16.msra.mxu0 0
        %1370 = vmatprep.subr.bf16.mxu0 0
        %1371 = vmatpush1.bf16.msra.mxu0 0
        %1372 = vmatprep.subr.bf16.mxu0 0
        %1373 = vmatpush1.bf16.msra.mxu0 0
        %1374 = vmatprep.subr.bf16.mxu0 0
        %1375 = vmatpush1.bf16.msra.mxu0 0
        %1376 = vmatprep.subr.bf16.mxu0 0
        %1377 = vmatpush1.bf16.msra.mxu0 0
        %1378 = vmatprep.subr.bf16.mxu0 0
        %1379 = vmatpush1.bf16.msra.mxu0 0
        %1380 = vmatprep.subr.bf16.mxu0 0
        %1381 = vmatpush1.bf16.msra.mxu0 0
        %1382 = vmatprep.mubr.bf16.mxu0 0
        %1383 = vmatmul.mubr.bf16.gmra.mrb[0].mxu0 %v1345
        %v1384 = vpop.f32.mrb[0].mxu0
        %v1385 = vadd.f32 0.0, %v1384
        %v1386 = vpop.f32.mrb[0].mxu0
        %v1387 = vpop.f32.mrb[0].mxu0
        %v1388 = vpop.f32.mrb[0].mxu0
        %1389 = vdwg.mxu0
        %1390 = vrot.lane.b32.xlu0 %v683, 112
        %v1391 = vpop.permute.xlu0 %1390
        %v1393 = vsel %vm684, %v1341, 0
        %v1396 = vsel %vm804, %v1391, 0
        %1398 = vmatprep.subr.bf16.mxu0 0
        %1399 = vmatpush1.bf16.msra.mxu0 %v1396
        %1400 = vmatprep.subr.bf16.mxu0 0
        %1401 = vmatpush1.bf16.msra.mxu0 0
        %1402 = vmatprep.subr.bf16.mxu0 0
        %1403 = vmatpush1.bf16.msra.mxu0 0
        %1404 = vmatprep.subr.bf16.mxu0 0
        %1405 = vmatpush1.bf16.msra.mxu0 0
        %1406 = vmatprep.subr.bf16.mxu0 0
        %1407 = vmatpush1.bf16.msra.mxu0 0
        %1408 = vmatprep.subr.bf16.mxu0 0
        %1409 = vmatpush1.bf16.msra.mxu0 0
        %1410 = vmatprep.subr.bf16.mxu0 0
        %1411 = vmatpush1.bf16.msra.mxu0 0
        %1412 = vmatprep.subr.bf16.mxu0 0
        %1413 = vmatpush1.bf16.msra.mxu0 0
        %1414 = vmatprep.subr.bf16.mxu0 0
        %1415 = vmatpush1.bf16.msra.mxu0 0
        %1416 = vmatprep.subr.bf16.mxu0 0
        %1417 = vmatpush1.bf16.msra.mxu0 0
        %1418 = vmatprep.subr.bf16.mxu0 0
        %1419 = vmatpush1.bf16.msra.mxu0 0
        %1420 = vmatprep.subr.bf16.mxu0 0
        %1421 = vmatpush1.bf16.msra.mxu0 0
        %1422 = vmatprep.subr.bf16.mxu0 0
        %1423 = vmatpush1.bf16.msra.mxu0 0
        %1424 = vmatprep.subr.bf16.mxu0 0
        %1425 = vmatpush1.bf16.msra.mxu0 0
        %1426 = vmatprep.subr.bf16.mxu0 0
        %1427 = vmatpush1.bf16.msra.mxu0 0
        %1428 = vmatprep.subr.bf16.mxu0 0
        %1429 = vmatpush1.bf16.msra.mxu0 0
        %1430 = vmatprep.mubr.bf16.mxu0 0
        %1431 = vmatmul.mubr.bf16.gmra.mrb[0].mxu0 %v1393
        %v1432 = vpop.f32.mrb[0].mxu0
        %v1433 = vadd.f32 0.0, %v1432
        %v1434 = vpop.f32.mrb[0].mxu0
        %v1435 = vpop.f32.mrb[0].mxu0
        %v1436 = vpop.f32.mrb[0].mxu0
        %1437 = vdwg.mxu0
        %v1438 = vpack.c.bf16 %v1433, %v1385
        %v1439 = vld [vmem:[%s462 + $0x8] sm:$0xf]
        %v1441 = vsel %vm684, %v1438, 0
        %v1444 = vsel %vm804, %v1439, 0
        %1446 = vmatprep.subr.bf16.mxu0 0
        %1447 = vmatpush1.bf16.msra.mxu0 %v1444
        %1448 = vmatprep.subr.bf16.mxu0 0
        %1449 = vmatpush1.bf16.msra.mxu0 0
        %1450 = vmatprep.subr.bf16.mxu0 0
        %1451 = vmatpush1.bf16.msra.mxu0 0
        %1452 = vmatprep.subr.bf16.mxu0 0
        %1453 = vmatpush1.bf16.msra.mxu0 0
        %1454 = vmatprep.subr.bf16.mxu0 0
        %1455 = vmatpush1.bf16.msra.mxu0 0
        %1456 = vmatprep.subr.bf16.mxu0 0
        %1457 = vmatpush1.bf16.msra.mxu0 0
        %1458 = vmatprep.subr.bf16.mxu0 0
        %1459 = vmatpush1.bf16.msra.mxu0 0
        %1460 = vmatprep.subr.bf16.mxu0 0
        %1461 = vmatpush1.bf16.msra.mxu0 0
        %1462 = vmatprep.subr.bf16.mxu0 0
        %1463 = vmatpush1.bf16.msra.mxu0 0
        %1464 = vmatprep.subr.bf16.mxu0 0
        %1465 = vmatpush1.bf16.msra.mxu0 0
        %1466 = vmatprep.subr.bf16.mxu0 0
        %1467 = vmatpush1.bf16.msra.mxu0 0
        %1468 = vmatprep.subr.bf16.mxu0 0
        %1469 = vmatpush1.bf16.msra.mxu0 0
        %1470 = vmatprep.subr.bf16.mxu0 0
        %1471 = vmatpush1.bf16.msra.mxu0 0
        %1472 = vmatprep.subr.bf16.mxu0 0
        %1473 = vmatpush1.bf16.msra.mxu0 0
        %1474 = vmatprep.subr.bf16.mxu0 0
        %1475 = vmatpush1.bf16.msra.mxu0 0
        %1476 = vmatprep.subr.bf16.mxu0 0
        %1477 = vmatpush1.bf16.msra.mxu0 0
        %1478 = vmatprep.mubr.bf16.mxu0 0
        %1479 = vmatmul.mubr.bf16.gmra.mrb[0].mxu0 %v1441
        %v1480 = vpop.f32.mrb[0].mxu0
        %v1481 = vadd.f32 0.0, %v1480
        %v1482 = vpop.f32.mrb[0].mxu0
        %v1483 = vpop.f32.mrb[0].mxu0
        %v1484 = vadd.f32 0.0, %v1483
        %v1485 = vpop.f32.mrb[0].mxu0
        %1486 = vdwg.mxu0
        %v1487 = vadd.f32 %v1212, %v1481
        %v1488 = vadd.f32 %v1215, %v1484
        %1489 = vrot.lane.b32.xlu0 %v678, 104
        %v1490 = vpop.permute.xlu0 %1489
        %1491 = vrot.lane.b32.xlu0 %v680, 104
        %v1492 = vpop.permute.xlu0 %1491
        %v1494 = vsel %vm684, %v1490, 0
        %v1497 = vsel %vm684, %v1492, 0
        %1499 = vmatprep.subr.bf16.mxu0 0
        %1500 = vmatpush1.bf16.xpose.msra.mxu0 %v1497
        %1501 = vmatprep.subr.bf16.mxu0 0
        %1502 = vmatpush1.bf16.xpose.msra.mxu0 0
        %1503 = vmatprep.subr.bf16.mxu0 0
        %1504 = vmatpush1.bf16.xpose.msra.mxu0 0
        %1505 = vmatprep.subr.bf16.mxu0 0
        %1506 = vmatpush1.bf16.xpose.msra.mxu0 0
        %1507 = vmatprep.subr.bf16.mxu0 0
        %1508 = vmatpush1.bf16.xpose.msra.mxu0 0
        %1509 = vmatprep.subr.bf16.mxu0 0
        %1510 = vmatpush1.bf16.xpose.msra.mxu0 0
        %1511 = vmatprep.subr.bf16.mxu0 0
        %1512 = vmatpush1.bf16.xpose.msra.mxu0 0
        %1513 = vmatprep.subr.bf16.mxu0 0
        %1514 = vmatpush1.bf16.xpose.msra.mxu0 0
        %1515 = vmatprep.subr.bf16.mxu0 0
        %1516 = vmatpush1.bf16.xpose.msra.mxu0 0
        %1517 = vmatprep.subr.bf16.mxu0 0
        %1518 = vmatpush1.bf16.xpose.msra.mxu0 0
        %1519 = vmatprep.subr.bf16.mxu0 0
        %1520 = vmatpush1.bf16.xpose.msra.mxu0 0
        %1521 = vmatprep.subr.bf16.mxu0 0
        %1522 = vmatpush1.bf16.xpose.msra.mxu0 0
        %1523 = vmatprep.subr.bf16.mxu0 0
        %1524 = vmatpush1.bf16.xpose.msra.mxu0 0
        %1525 = vmatprep.subr.bf16.mxu0 0
        %1526 = vmatpush1.bf16.xpose.msra.mxu0 0
        %1527 = vmatprep.subr.bf16.mxu0 0
        %1528 = vmatpush1.bf16.xpose.msra.mxu0 0
        %1529 = vmatprep.subr.bf16.mxu0 0
        %1530 = vmatpush1.bf16.xpose.msra.mxu0 0
        %1531 = vmatprep.mubr.bf16.mxu0 0
        %1532 = vmatmul.mubr.bf16.gmra.mrb[0].mxu0 %v1494
        %v1533 = vpop.f32.mrb[0].mxu0
        %v1534 = vadd.f32 0.0, %v1533
        %v1535 = vpop.f32.mrb[0].mxu0
        %v1536 = vpop.f32.mrb[0].mxu0
        %v1537 = vpop.f32.mrb[0].mxu0
        %1538 = vdwg.mxu0
        %1539 = vrot.lane.b32.xlu0 %v679, 104
        %v1540 = vpop.permute.xlu0 %1539
        %1541 = vrot.lane.b32.xlu0 %v681, 104
        %v1542 = vpop.permute.xlu0 %1541
        %v1544 = vsel %vm684, %v1540, 0
        %v1547 = vsel %vm684, %v1542, 0
        %1549 = vmatprep.subr.bf16.mxu0 0
        %1550 = vmatpush1.bf16.xpose.msra.mxu0 %v1547
        %1551 = vmatprep.subr.bf16.mxu0 0
        %1552 = vmatpush1.bf16.xpose.msra.mxu0 0
        %1553 = vmatprep.subr.bf16.mxu0 0
        %1554 = vmatpush1.bf16.xpose.msra.mxu0 0
        %1555 = vmatprep.subr.bf16.mxu0 0
        %1556 = vmatpush1.bf16.xpose.msra.mxu0 0
        %1557 = vmatprep.subr.bf16.mxu0 0
        %1558 = vmatpush1.bf16.xpose.msra.mxu0 0
        %1559 = vmatprep.subr.bf16.mxu0 0
        %1560 = vmatpush1.bf16.xpose.msra.mxu0 0
        %1561 = vmatprep.subr.bf16.mxu0 0
        %1562 = vmatpush1.bf16.xpose.msra.mxu0 0
        %1563 = vmatprep.subr.bf16.mxu0 0
        %1564 = vmatpush1.bf16.xpose.msra.mxu0 0
        %1565 = vmatprep.subr.bf16.mxu0 0
        %1566 = vmatpush1.bf16.xpose.msra.mxu0 0
        %1567 = vmatprep.subr.bf16.mxu0 0
        %1568 = vmatpush1.bf16.xpose.msra.mxu0 0
        %1569 = vmatprep.subr.bf16.mxu0 0
        %1570 = vmatpush1.bf16.xpose.msra.mxu0 0
        %1571 = vmatprep.subr.bf16.mxu0 0
        %1572 = vmatpush1.bf16.xpose.msra.mxu0 0
        %1573 = vmatprep.subr.bf16.mxu0 0
        %1574 = vmatpush1.bf16.xpose.msra.mxu0 0
        %1575 = vmatprep.subr.bf16.mxu0 0
        %1576 = vmatpush1.bf16.xpose.msra.mxu0 0
        %1577 = vmatprep.subr.bf16.mxu0 0
        %1578 = vmatpush1.bf16.xpose.msra.mxu0 0
        %1579 = vmatprep.subr.bf16.mxu0 0
        %1580 = vmatpush1.bf16.xpose.msra.mxu0 0
        %1581 = vmatprep.mubr.bf16.mxu0 0
        %1582 = vmatmul.mubr.bf16.gmra.mrb[0].mxu0 %v1544
        %v1583 = vpop.f32.mrb[0].mxu0
        %v1584 = vadd.f32 0.0, %v1583
        %v1585 = vpop.f32.mrb[0].mxu0
        %v1586 = vpop.f32.mrb[0].mxu0
        %v1587 = vpop.f32.mrb[0].mxu0
        %1588 = vdwg.mxu0
        %v1589 = vsel %vm684, %v1534, -inf
        %1590 = vmax.xlane.f32.xlu0 %v1589
        %v1591 = vpop.xlane.xlu0 %1590
        %v1592 = vsel %vm684, %v1584, -inf
        %1593 = vmax.xlane.f32.xlu0 %v1592
        %v1594 = vpop.xlane.xlu0 %1593
        %v1595 = vsub.f32 %v1534, %v1591
        %v1596 = vsub.f32 %v1584, %v1594
        %v1597 = vmul.f32 %v1595, 1.442695
        %v1598 = vpow.pop %v1597
        %v1599 = vmul.f32 %v1596, 1.442695
        %v1600 = vpow.pop %v1599
        %v1601 = vsel %vm684, %v1598, 0.0
        %1602 = vadd.xlane.f32.xlu0 %v1601
        %v1603 = vpop.xlane.xlu0 %1602
        %v1604 = vsel %vm684, %v1600, 0.0
        %1605 = vadd.xlane.f32.xlu0 %v1604
        %v1606 = vpop.xlane.xlu0 %1605
        %v1607 = vrcp.pop %v1603
        %v1608 = vrcp.pop %v1606
        %v1609 = vmul.f32 %v1598, %v1607
        %v1610 = vmul.f32 %v1600, %v1608
        %v1611 = vpack.c.bf16 %v1609, %v1609
        %v1612 = vpack.c.bf16 %v1610, %v1610
        %1613 = vrot.lane.b32.xlu0 %v682, 104
        %v1614 = vpop.permute.xlu0 %1613
        %v1616 = vsel %vm684, %v1611, 0
        %v1619 = vsel %vm804, %v1614, 0
        %1621 = vmatprep.subr.bf16.mxu0 0
        %1622 = vmatpush1.bf16.msra.mxu0 %v1619
        %1623 = vmatprep.subr.bf16.mxu0 0
        %1624 = vmatpush1.bf16.msra.mxu0 0
        %1625 = vmatprep.subr.bf16.mxu0 0
        %1626 = vmatpush1.bf16.msra.mxu0 0
        %1627 = vmatprep.subr.bf16.mxu0 0
        %1628 = vmatpush1.bf16.msra.mxu0 0
        %1629 = vmatprep.subr.bf16.mxu0 0
        %1630 = vmatpush1.bf16.msra.mxu0 0
        %1631 = vmatprep.subr.bf16.mxu0 0
        %1632 = vmatpush1.bf16.msra.mxu0 0
        %1633 = vmatprep.subr.bf16.mxu0 0
        %1634 = vmatpush1.bf16.msra.mxu0 0
        %1635 = vmatprep.subr.bf16.mxu0 0
        %1636 = vmatpush1.bf16.msra.mxu0 0
        %1637 = vmatprep.subr.bf16.mxu0 0
        %1638 = vmatpush1.bf16.msra.mxu0 0
        %1639 = vmatprep.subr.bf16.mxu0 0
        %1640 = vmatpush1.bf16.msra.mxu0 0
        %1641 = vmatprep.subr.bf16.mxu0 0
        %1642 = vmatpush1.bf16.msra.mxu0 0
        %1643 = vmatprep.subr.bf16.mxu0 0
        %1644 = vmatpush1.bf16.msra.mxu0 0
        %1645 = vmatprep.subr.bf16.mxu0 0
        %1646 = vmatpush1.bf16.msra.mxu0 0
        %1647 = vmatprep.subr.bf16.mxu0 0
        %1648 = vmatpush1.bf16.msra.mxu0 0
        %1649 = vmatprep.subr.bf16.mxu0 0
        %1650 = vmatpush1.bf16.msra.mxu0 0
        %1651 = vmatprep.subr.bf16.mxu0 0
        %1652 = vmatpush1.bf16.msra.mxu0 0
        %1653 = vmatprep.mubr.bf16.mxu0 0
        %1654 = vmatmul.mubr.bf16.gmra.mrb[0].mxu0 %v1616
        %v1655 = vpop.f32.mrb[0].mxu0
        %v1656 = vadd.f32 0.0, %v1655
        %v1657 = vpop.f32.mrb[0].mxu0
        %v1658 = vpop.f32.mrb[0].mxu0
        %v1659 = vpop.f32.mrb[0].mxu0
        %1660 = vdwg.mxu0
        %1661 = vrot.lane.b32.xlu0 %v683, 104
        %v1662 = vpop.permute.xlu0 %1661
        %v1664 = vsel %vm684, %v1612, 0
        %v1667 = vsel %vm804, %v1662, 0
        %1669 = vmatprep.subr.bf16.mxu0 0
        %1670 = vmatpush1.bf16.msra.mxu0 %v1667
        %1671 = vmatprep.subr.bf16.mxu0 0
        %1672 = vmatpush1.bf16.msra.mxu0 0
        %1673 = vmatprep.subr.bf16.mxu0 0
        %1674 = vmatpush1.bf16.msra.mxu0 0
        %1675 = vmatprep.subr.bf16.mxu0 0
        %1676 = vmatpush1.bf16.msra.mxu0 0
        %1677 = vmatprep.subr.bf16.mxu0 0
        %1678 = vmatpush1.bf16.msra.mxu0 0
        %1679 = vmatprep.subr.bf16.mxu0 0
        %1680 = vmatpush1.bf16.msra.mxu0 0
        %1681 = vmatprep.subr.bf16.mxu0 0
        %1682 = vmatpush1.bf16.msra.mxu0 0
        %1683 = vmatprep.subr.bf16.mxu0 0
        %1684 = vmatpush1.bf16.msra.mxu0 0
        %1685 = vmatprep.subr.bf16.mxu0 0
        %1686 = vmatpush1.bf16.msra.mxu0 0
        %1687 = vmatprep.subr.bf16.mxu0 0
        %1688 = vmatpush1.bf16.msra.mxu0 0
        %1689 = vmatprep.subr.bf16.mxu0 0
        %1690 = vmatpush1.bf16.msra.mxu0 0
        %1691 = vmatprep.subr.bf16.mxu0 0
        %1692 = vmatpush1.bf16.msra.mxu0 0
        %1693 = vmatprep.subr.bf16.mxu0 0
        %1694 = vmatpush1.bf16.msra.mxu0 0
        %1695 = vmatprep.subr.bf16.mxu0 0
        %1696 = vmatpush1.bf16.msra.mxu0 0
        %1697 = vmatprep.subr.bf16.mxu0 0
        %1698 = vmatpush1.bf16.msra.mxu0 0
        %1699 = vmatprep.subr.bf16.mxu0 0
        %1700 = vmatpush1.bf16.msra.mxu0 0
        %1701 = vmatprep.mubr.bf16.mxu0 0
        %1702 = vmatmul.mubr.bf16.gmra.mrb[0].mxu0 %v1664
        %v1703 = vpop.f32.mrb[0].mxu0
        %v1704 = vadd.f32 0.0, %v1703
        %v1705 = vpop.f32.mrb[0].mxu0
        %v1706 = vpop.f32.mrb[0].mxu0
        %v1707 = vpop.f32.mrb[0].mxu0
        %1708 = vdwg.mxu0
        %v1709 = vpack.c.bf16 %v1704, %v1656
        %v1710 = vld [vmem:[%s462 + $0xc] sm:$0xf]
        %v1712 = vsel %vm684, %v1709, 0
        %v1715 = vsel %vm804, %v1710, 0
        %1717 = vmatprep.subr.bf16.mxu0 0
        %1718 = vmatpush1.bf16.msra.mxu0 %v1715
        %1719 = vmatprep.subr.bf16.mxu0 0
        %1720 = vmatpush1.bf16.msra.mxu0 0
        %1721 = vmatprep.subr.bf16.mxu0 0
        %1722 = vmatpush1.bf16.msra.mxu0 0
        %1723 = vmatprep.subr.bf16.mxu0 0
        %1724 = vmatpush1.bf16.msra.mxu0 0
        %1725 = vmatprep.subr.bf16.mxu0 0
        %1726 = vmatpush1.bf16.msra.mxu0 0
        %1727 = vmatprep.subr.bf16.mxu0 0
        %1728 = vmatpush1.bf16.msra.mxu0 0
        %1729 = vmatprep.subr.bf16.mxu0 0
        %1730 = vmatpush1.bf16.msra.mxu0 0
        %1731 = vmatprep.subr.bf16.mxu0 0
        %1732 = vmatpush1.bf16.msra.mxu0 0
        %1733 = vmatprep.subr.bf16.mxu0 0
        %1734 = vmatpush1.bf16.msra.mxu0 0
        %1735 = vmatprep.subr.bf16.mxu0 0
        %1736 = vmatpush1.bf16.msra.mxu0 0
        %1737 = vmatprep.subr.bf16.mxu0 0
        %1738 = vmatpush1.bf16.msra.mxu0 0
        %1739 = vmatprep.subr.bf16.mxu0 0
        %1740 = vmatpush1.bf16.msra.mxu0 0
        %1741 = vmatprep.subr.bf16.mxu0 0
        %1742 = vmatpush1.bf16.msra.mxu0 0
        %1743 = vmatprep.subr.bf16.mxu0 0
        %1744 = vmatpush1.bf16.msra.mxu0 0
        %1745 = vmatprep.subr.bf16.mxu0 0
        %1746 = vmatpush1.bf16.msra.mxu0 0
        %1747 = vmatprep.subr.bf16.mxu0 0
        %1748 = vmatpush1.bf16.msra.mxu0 0
        %1749 = vmatprep.mubr.bf16.mxu0 0
        %1750 = vmatmul.mubr.bf16.gmra.mrb[0].mxu0 %v1712
        %v1751 = vpop.f32.mrb[0].mxu0
        %v1752 = vadd.f32 0.0, %v1751
        %v1753 = vpop.f32.mrb[0].mxu0
        %v1754 = vpop.f32.mrb[0].mxu0
        %v1755 = vadd.f32 0.0, %v1754
        %v1756 = vpop.f32.mrb[0].mxu0
        %1757 = vdwg.mxu0
        %v1758 = vadd.f32 %v1487, %v1752
        %v1759 = vadd.f32 %v1488, %v1755
        %v1760 = vlaneseq
        %v1761 = vshrl.u32 %v1760, 7
        %v1762 = vsub.s32 3, %v1761
        %v1763 = vrot.slane %v486, %v1762
        %v1764 = vadd.f32 %v1758, %v1763
        %v1765 = vadd.f32 %v1759, %v1763
        %v1766 = vadd.f32 %v484, %v1764
        %v1767 = vadd.f32 %v485, %v1765
        %v1768 = vsel %vm509, %v1766, 0.0
        %1769 = vadd.xlane.f32.xlu0 %v1768
        %v1770 = vpop.xlane.xlu0 %1769
        %v1771 = vsel %vm509, %v1767, 0.0
        %1772 = vadd.xlane.f32.xlu0 %v1771
        %v1773 = vpop.xlane.xlu0 %1772
        %v1774 = vrcp.pop 32.0
        %v1775 = vmul.f32 %v1770, %v1774
        %v1776 = vmul.f32 %v1773, %v1774
        %v1777 = vsub.f32 %v1766, %v1775
        %v1778 = vsub.f32 %v1767, %v1776
        %v1779 = vmul.f32 %v1777, %v1777
        %v1780 = vmul.f32 %v1778, %v1778
        %v1781 = vsel %vm509, %v1779, 0.0
        %1782 = vadd.xlane.f32.xlu0 %v1781
        %v1783 = vpop.xlane.xlu0 %1782
        %v1784 = vsel %vm509, %v1780, 0.0
        %1785 = vadd.xlane.f32.xlu0 %v1784
        %v1786 = vpop.xlane.xlu0 %1785
        %v1787 = vmul.f32 %v1783, %v1774
        %v1788 = vmul.f32 %v1786, %v1774
        %v1789 = vadd.f32 %v1787, 1e-05
        %v1790 = vadd.f32 %v1788, 1e-05
        %v1791 = vrsqrt.pop %v1789
        %v1792 = vrsqrt.pop %v1790
        %v1793 = vmul.f32 %v1777, %v1791
        %v1794 = vmul.f32 %v1778, %v1792
        %v1795 = vlaneseq
        %v1796 = vshrl.u32 %v1795, 7
        %v1797 = vsub.s32 6, %v1796
        %v1798 = vrot.slane %v486, %v1797
        %v1799 = vmul.f32 %v1793, %v1798
        %v1800 = vmul.f32 %v1794, %v1798
        %v1801 = vlaneseq
        %v1802 = vshrl.u32 %v1801, 7
        %v1803 = vsub.s32 7, %v1802
        %v1804 = vrot.slane %v486, %v1803
        %v1805 = vadd.f32 %v1799, %v1804
        %v1806 = vadd.f32 %v1800, %v1804
        %v1807 = vpack.c.bf16 %v1806, %v1805
        %v1808 = vld [vmem:[%s467] sm:$0xf]
        %v1809 = vld [vmem:[%s467 + $0x4] sm:$0xf]
        %v1810 = vld [vmem:[%s467 + $0x8] sm:$0xf]
        %v1811 = vld [vmem:[%s467 + $0xc] sm:$0xf]
        %v1812 = vlaneseq
        %v1813 = vshrl.u32 %v1812, 7
        %v1814 = vsub.s32 4, %v1813
        %v1815 = vrot.slane %v486, %v1814
        %v1820 = vunpack.c.l.b16 %v1808
        %v1821 = vunpack.c.l.b16 %v1809
        %v1822 = vunpack.c.l.b16 %v1810
        %v1823 = vunpack.c.l.b16 %v1811
        %v1824 = vpack.c.b16 %v1821, %v1820
        %v1825 = vpack.c.b16 %v1823, %v1822
        %v1829 = vsel %vm509, %v1807, 0
        %1831 = vmatprep.subr.bf16.mxu0 0
        %1832 = vmatpush1.bf16.msra.mxu0 %v1824
        %1833 = vmatprep.subr.bf16.mxu0 0
        %1834 = vmatpush1.bf16.msra.mxu0 %v1825
        %1835 = vmatprep.subr.bf16.mxu0 0
        %1836 = vmatpush1.bf16.msra.mxu0 0
        %1837 = vmatprep.subr.bf16.mxu0 0
        %1838 = vmatpush1.bf16.msra.mxu0 0
        %1839 = vmatprep.subr.bf16.mxu0 0
        %1840 = vmatpush1.bf16.msra.mxu0 0
        %1841 = vmatprep.subr.bf16.mxu0 0
        %1842 = vmatpush1.bf16.msra.mxu0 0
        %1843 = vmatprep.subr.bf16.mxu0 0
        %1844 = vmatpush1.bf16.msra.mxu0 0
        %1845 = vmatprep.subr.bf16.mxu0 0
        %1846 = vmatpush1.bf16.msra.mxu0 0
        %1847 = vmatprep.subr.bf16.mxu0 0
        %1848 = vmatpush1.bf16.msra.mxu0 0
        %1849 = vmatprep.subr.bf16.mxu0 0
        %1850 = vmatpush1.bf16.msra.mxu0 0
        %1851 = vmatprep.subr.bf16.mxu0 0
        %1852 = vmatpush1.bf16.msra.mxu0 0
        %1853 = vmatprep.subr.bf16.mxu0 0
        %1854 = vmatpush1.bf16.msra.mxu0 0
        %1855 = vmatprep.subr.bf16.mxu0 0
        %1856 = vmatpush1.bf16.msra.mxu0 0
        %1857 = vmatprep.subr.bf16.mxu0 0
        %1858 = vmatpush1.bf16.msra.mxu0 0
        %1859 = vmatprep.subr.bf16.mxu0 0
        %1860 = vmatpush1.bf16.msra.mxu0 0
        %1861 = vmatprep.subr.bf16.mxu0 0
        %1862 = vmatpush1.bf16.msra.mxu0 0
        %1863 = vmatprep.mubr.bf16.mxu0 0
        %1864 = vmatmul.mubr.bf16.gmra.mrb[0].mxu0 %v1829
        %v1865 = vpop.f32.mrb[0].mxu0
        %v1866 = vadd.f32 %v1815, %v1865
        %v1867 = vpop.f32.mrb[0].mxu0
        %v1868 = vpop.f32.mrb[0].mxu0
        %v1869 = vadd.f32 %v1815, %v1868
        %v1870 = vpop.f32.mrb[0].mxu0
        %1871 = vdwg.mxu0
        %v1872 = vmax.f32 %v1866, 0.0
        %v1873 = vmax.f32 %v1869, 0.0
        %v1874 = vpack.c.bf16 %v1873, %v1872
        %v1875 = vld [vmem:[%s472] sm:$0xf]
        %v1876 = vld [vmem:[%s472 + $0x4] sm:$0xf]
        %v1877 = vld [vmem:[%s472 + $0x8] sm:$0xf]
        %v1878 = vld [vmem:[%s472 + $0xc] sm:$0xf]
        %v1879 = vld [vmem:[%s472 + $0x10] sm:$0xf]
        %v1880 = vld [vmem:[%s472 + $0x14] sm:$0xf]
        %v1881 = vld [vmem:[%s472 + $0x18] sm:$0xf]
        %v1882 = vld [vmem:[%s472 + $0x1c] sm:$0xf]
        %v1883 = vld [vmem:[%s472 + $0x20] sm:$0xf]
        %v1884 = vld [vmem:[%s472 + $0x24] sm:$0xf]
        %v1885 = vld [vmem:[%s472 + $0x28] sm:$0xf]
        %v1886 = vld [vmem:[%s472 + $0x2c] sm:$0xf]
        %v1887 = vld [vmem:[%s472 + $0x30] sm:$0xf]
        %v1888 = vld [vmem:[%s472 + $0x34] sm:$0xf]
        %v1889 = vld [vmem:[%s472 + $0x38] sm:$0xf]
        %v1890 = vld [vmem:[%s472 + $0x3c] sm:$0xf]
        %v1891 = vlaneseq
        %v1892 = vshrl.u32 %v1891, 7
        %v1893 = vsub.s32 5, %v1892
        %v1894 = vrot.slane %v486, %v1893
        %v1911 = vunpack.c.l.b16 %v1875
        %v1912 = vunpack.c.l.b16 %v1876
        %v1913 = vunpack.c.l.b16 %v1877
        %v1914 = vunpack.c.l.b16 %v1878
        %v1915 = vunpack.c.l.b16 %v1879
        %v1916 = vunpack.c.l.b16 %v1880
        %v1917 = vunpack.c.l.b16 %v1881
        %v1918 = vunpack.c.l.b16 %v1882
        %v1919 = vunpack.c.l.b16 %v1883
        %v1920 = vunpack.c.l.b16 %v1884
        %v1921 = vunpack.c.l.b16 %v1885
        %v1922 = vunpack.c.l.b16 %v1886
        %v1923 = vunpack.c.l.b16 %v1887
        %v1924 = vunpack.c.l.b16 %v1888
        %v1925 = vunpack.c.l.b16 %v1889
        %v1926 = vunpack.c.l.b16 %v1890
        %v1927 = vpack.c.b16 %v1912, %v1911
        %v1928 = vpack.c.b16 %v1914, %v1913
        %v1929 = vpack.c.b16 %v1916, %v1915
        %v1930 = vpack.c.b16 %v1918, %v1917
        %v1931 = vpack.c.b16 %v1920, %v1919
        %v1932 = vpack.c.b16 %v1922, %v1921
        %v1933 = vpack.c.b16 %v1924, %v1923
        %v1934 = vpack.c.b16 %v1926, %v1925
        %1943 = vmatprep.subr.bf16.mxu0 0
        %1944 = vmatpush1.bf16.msra.mxu0 %v1927
        %1945 = vmatprep.subr.bf16.mxu0 0
        %1946 = vmatpush1.bf16.msra.mxu0 %v1928
        %1947 = vmatprep.subr.bf16.mxu0 0
        %1948 = vmatpush1.bf16.msra.mxu0 %v1929
        %1949 = vmatprep.subr.bf16.mxu0 0
        %1950 = vmatpush1.bf16.msra.mxu0 %v1930
        %1951 = vmatprep.subr.bf16.mxu0 0
        %1952 = vmatpush1.bf16.msra.mxu0 %v1931
        %1953 = vmatprep.subr.bf16.mxu0 0
        %1954 = vmatpush1.bf16.msra.mxu0 %v1932
        %1955 = vmatprep.subr.bf16.mxu0 0
        %1956 = vmatpush1.bf16.msra.mxu0 %v1933
        %1957 = vmatprep.subr.bf16.mxu0 0
        %1958 = vmatpush1.bf16.msra.mxu0 %v1934
        %1959 = vmatprep.subr.bf16.mxu0 0
        %1960 = vmatpush1.bf16.msra.mxu0 0
        %1961 = vmatprep.subr.bf16.mxu0 0
        %1962 = vmatpush1.bf16.msra.mxu0 0
        %1963 = vmatprep.subr.bf16.mxu0 0
        %1964 = vmatpush1.bf16.msra.mxu0 0
        %1965 = vmatprep.subr.bf16.mxu0 0
        %1966 = vmatpush1.bf16.msra.mxu0 0
        %1967 = vmatprep.subr.bf16.mxu0 0
        %1968 = vmatpush1.bf16.msra.mxu0 0
        %1969 = vmatprep.subr.bf16.mxu0 0
        %1970 = vmatpush1.bf16.msra.mxu0 0
        %1971 = vmatprep.subr.bf16.mxu0 0
        %1972 = vmatpush1.bf16.msra.mxu0 0
        %1973 = vmatprep.subr.bf16.mxu0 0
        %1974 = vmatpush1.bf16.msra.mxu0 0
        %1975 = vmatprep.mubr.bf16.mxu0 0
        %1976 = vmatmul.mubr.bf16.gmra.mrb[0].mxu0 %v1874
        %v1977 = vpop.f32.mrb[0].mxu0
        %v1978 = vadd.f32 %v1894, %v1977
        %v1979 = vpop.f32.mrb[0].mxu0
        %v1980 = vpop.f32.mrb[0].mxu0
        %v1981 = vadd.f32 %v1894, %v1980
        %v1982 = vpop.f32.mrb[0].mxu0
        %1983 = vdwg.mxu0
        %v1984 = vadd.f32 %v1805, %v1978
        %v1985 = vadd.f32 %v1806, %v1981
        %v1986 = vsel %vm509, %v1984, 0.0
        %1987 = vadd.xlane.f32.xlu0 %v1986
        %v1988 = vpop.xlane.xlu0 %1987
        %v1989 = vsel %vm509, %v1985, 0.0
        %1990 = vadd.xlane.f32.xlu0 %v1989
        %v1991 = vpop.xlane.xlu0 %1990
        %v1992 = vmul.f32 %v1988, %v1774
        %v1993 = vmul.f32 %v1991, %v1774
        %v1994 = vsub.f32 %v1984, %v1992
        %v1995 = vsub.f32 %v1985, %v1993
        %v1996 = vmul.f32 %v1994, %v1994
        %v1997 = vmul.f32 %v1995, %v1995
        %v1998 = vsel %vm509, %v1996, 0.0
        %1999 = vadd.xlane.f32.xlu0 %v1998
        %v2000 = vpop.xlane.xlu0 %1999
        %v2001 = vsel %vm509, %v1997, 0.0
        %2002 = vadd.xlane.f32.xlu0 %v2001
        %v2003 = vpop.xlane.xlu0 %2002
        %v2004 = vmul.f32 %v2000, %v1774
        %v2005 = vmul.f32 %v2003, %v1774
        %v2006 = vadd.f32 %v2004, 1e-05
        %v2007 = vadd.f32 %v2005, 1e-05
        %v2008 = vrsqrt.pop %v2006
        %v2009 = vrsqrt.pop %v2007
        %v2010 = vmul.f32 %v1994, %v2008
        %v2011 = vmul.f32 %v1995, %v2009
        %v2012 = vlaneseq
        %v2013 = vshrl.u32 %v2012, 7
        %v2014 = vsub.s32 0, %v2013
        %v2015 = vrot.slane %v487, %v2014
        %v2016 = vmul.f32 %v2010, %v2015
        %v2017 = vmul.f32 %v2011, %v2015
        %v2018 = vlaneseq
        %v2019 = vshrl.u32 %v2018, 7
        %v2020 = vsub.s32 1, %v2019
        %v2021 = vrot.slane %v487, %v2020
        %v2022 = vadd.f32 %v2016, %v2021
        %v2023 = vadd.f32 %v2017, %v2021
        %p2024 = scmp.lt.s32.totalorder %s29, 1
        // Predicated region
        $region65: #{tpu_custom_call.1} parent=51 // pred_check
          %p2025 = pneg %p2024
        $region66: #{tpu_custom_call.1} parent=51 // pred_check_branch
          %2027 = sbr.rel (%p2025) target = $region68
        $region67: #{tpu_custom_call.1} parent=51 // pred_region
          %2028 = vst.msk [vmem:[#allocation2] sm:$0xff] %vm509, %v2022
          %2029 = vst.msk [vmem:[#allocation2 + $0x8] sm:$0xff] %vm509, %v2023
        $region68: #{tpu_custom_call.1} parent=51 // pred_fallthru
          _
        %p2030 = scmp.eq.s32.totalorder %s29, 1
        // Predicated region
        $region69: #{tpu_custom_call.1} parent=51 // pred_check
          %p2031 = pneg %p2030
        $region70: #{tpu_custom_call.1} parent=51 // pred_check_branch
          %2033 = sbr.rel (%p2031) target = $region72
        $region71: #{tpu_custom_call.1} parent=51 // pred_region
          %2034 = vst.msk [vmem:[#allocation8] sm:$0xff] %vm509, %v2022
          %2035 = vst.msk [vmem:[#allocation8 + $0x8] sm:$0xff] %vm509, %v2023
        $region72: #{tpu_custom_call.1} parent=51 // pred_fallthru
          _
        // Predicated region
        $region73: #{tpu_custom_call.1} parent=51 // pred_check
          %p2036 = pneg %p262
        $region74: #{tpu_custom_call.1} parent=51 // pred_check_branch
          %2038 = sbr.rel (%p2036) target = $region76
        $region75: #{tpu_custom_call.1} parent=51 // pred_region
          %s2039 = smul.u32 2, %s28
          %s2041 = ssub.s32 256, 256
          %2042 = vsyncadd [#allocation5], %s2041
          %s2043 = smul.addr %s2039, 128
          %s2044 = scalar_lea.hbm %s8, %s2043
          %s2045 = sshll.u32 [#allocation8], 4
          %s2046 = int_to_ptr.vmem [resolvable:$true] %s2045
          %2051 = dma.vmem_to_hbm [thread:$0]  %s2046, 256, %s2044, [#allocation5], 128, 128, 8
        $region76: #{tpu_custom_call.1} parent=51 // pred_fallthru
          _
        // Predicated region
        $region77: #{tpu_custom_call.1} parent=51 // pred_check
          %p2052 = pneg %p262
        $region78: #{tpu_custom_call.1} parent=51 // pred_check_branch
          %2054 = sbr.rel (%p2052) target = $region80
        $region79: #{tpu_custom_call.1} parent=51 // pred_region
          %2055 = dma.done [#allocation5], 256
        $region80: #{tpu_custom_call.1} parent=51 // pred_fallthru
          _
      $region52: #{tpu_custom_call.1} parent=5 // pred_fallthru
        _
      %p2056 = scmp.le.s32.totalorder 2, %s19
      // Predicated region
      $region81: #{tpu_custom_call.1} parent=5 // pred_check
        %p2057 = pneg %p2056
      $region82: #{tpu_custom_call.1} parent=5 // pred_check_branch
        %2059 = sbr.rel (%p2057) target = $region84
      $region83: #{tpu_custom_call.1} parent=5 // pred_region
        %s2060 = ssub.s32 %s19, 2
      $region84: #{tpu_custom_call.1} parent=5 // pred_fallthru
        _
    $region6: #{tpu_custom_call.1} parent=1 // loop_footer
      %s23 = sadd.s32 1, %s19
    $region7: #{tpu_custom_call.1} parent=1 // loop_footer_branch
      %18 = sbr.rel target = $region3
    $region8: #{tpu_custom_call.1} parent=1 // loop_exit
      _
    %2061 = vsyncpa [#allocation4], 1
    %s2062 = scalar_lea.sflag [#allocation4], 1
    %2063 = vsyncpa %s2062, 1
    %2064 = vsyncpa [#allocation7], 1
    %s2065 = scalar_lea.sflag [#allocation7], 1
    %2066 = vsyncpa %s2065, 1
    %2067 = vsyncpa [#allocation5], 1
    %s2068 = scalar_lea.sflag [#allocation5], 1
    %2069 = vsyncpa %s2068, 1

</llo_original>
